<compile_context>
chip_gen: v7x
topology: tpu7x:2x2x1
jax: 0.10.0
libtpu: 0.0.40
codegen_flags: <defaults>
</compile_context>

<pallas_src>
import math

import jax
import jax.numpy as jnp
from jax import lax
from jax.experimental import pallas as pl
from jax.experimental.pallas import tpu as pltpu


# ----------------------------------------------------------------------------
# Pallas kernel: batched-over-modes complex channel mixing as real MXU dots.
#   wr/wi: (Kb, O, I)   Wr^T / Wi^T per retained mode
#   xr/xi: (Kb, I, Pb)  Re / Im of the mode-sliced spectrum, P = B*spatial
#   yr/yi: (Kb, O, Pb)  Re / Im of the mixed spectrum (f32 accumulation)
# Complex product formed in VMEM: Yr = Wr^T Xr - Wi^T Xi, Yi = Wi^T Xr + Wr^T Xi.
# ----------------------------------------------------------------------------
def _mode_mix_kernel(wr_ref, wi_ref, xr_ref, xi_ref, yr_ref, yi_ref):
    dn = (((2,), (1,)), ((0,), (0,)))      # contract channel I, batch over modes
    wr, wi = wr_ref[...], wi_ref[...]
    xr, xi = xr_ref[...], xi_ref[...]
    rr = lax.dot_general(wr, xr, dn, preferred_element_type=jnp.float32)
    ii = lax.dot_general(wi, xi, dn, preferred_element_type=jnp.float32)
    ir = lax.dot_general(wi, xr, dn, preferred_element_type=jnp.float32)
    ri = lax.dot_general(wr, xi, dn, preferred_element_type=jnp.float32)
    yr_ref[...] = rr - ii
    yi_ref[...] = ir + ri


def _vmem_budget_bytes():
    """Generation-aware VMEM limit (v5e/v6e: 128 MiB, v7x: 64 MiB per TC)."""
    cap = 64 * 1024 * 1024
    try:
        cap = int(pltpu.get_tpu_info().vmem_capacity_bytes)
    except Exception:  # non-TPU trace / older API — fall back conservatively
        pass
    return min((3 * cap) // 4, 96 * 1024 * 1024)


def _mode_mix(wr, wi, xr, xi):
    """wr/wi: (K, O, I); xr/xi: (K, I, P) with P a multiple of 128.

    Returns (yr, yi): (K, O, P) float32.
    """
    K, O, I = wr.shape
    P = xr.shape[-1]
    x_item = jnp.dtype(xr.dtype).itemsize
    w_item = jnp.dtype(wr.dtype).itemsize

    vmem_limit = _vmem_budget_bytes()
    budget = vmem_limit // 3                      # headroom for temps / regalloc

    pb = min(P, 2048)                             # lane-dense, multiple of 128
    per_mode = 2 * (2 * I * pb * x_item           # xr + xi blocks
                    + 2 * O * pb * 4              # yr + yi blocks (f32)
                    + 2 * O * I * w_item)         # wr + wi blocks  (x2: dbl buffer)
    kb = max(1, min(K, budget // max(per_mode, 1)))
    if K >= 2:
        # keep >= 2 mode blocks: software pipelining + work for both v7x cores
        kb = min(kb, pl.cdiv(K, 2))

    grid = (pl.cdiv(K, kb), pl.cdiv(P, pb))       # P innermost: weights stay resident

    flops = 8 * K * O * I * P
    bytes_accessed = (2 * K * I * P * x_item + 2 * K * O * I * w_item
                      + 2 * K * O * P * 4)

    return pl.pallas_call(
        _mode_mix_kernel,
        grid=grid,
        in_specs=[
            pl.BlockSpec((kb, O, I), lambda k, p: (k, 0, 0)),
            pl.BlockSpec((kb, O, I), lambda k, p: (k, 0, 0)),
            pl.BlockSpec((kb, I, pb), lambda k, p: (k, 0, p)),
            pl.BlockSpec((kb, I, pb), lambda k, p: (k, 0, p)),
        ],
        out_specs=[
            pl.BlockSpec((kb, O, pb), lambda k, p: (k, 0, p)),
            pl.BlockSpec((kb, O, pb), lambda k, p: (k, 0, p)),
        ],
        out_shape=(
            jax.ShapeDtypeStruct((K, O, P), jnp.float32),
            jax.ShapeDtypeStruct((K, O, P), jnp.float32),
        ),
        compiler_params=pltpu.CompilerParams(
            dimension_semantics=("parallel", "parallel"),
            vmem_limit_bytes=int(vmem_limit),
        ),
        cost_estimate=pl.CostEstimate(
            flops=flops, transcendentals=0, bytes_accessed=bytes_accessed),
    )(wr, wi, xr, xi)


# ----------------------------------------------------------------------------
# Wrapper-side packing glue (operates only on mode-sliced tensors / weights).
# ----------------------------------------------------------------------------
def _round_up(v, m):
    return ((v + m - 1) // m) * m


def _pack_weight(w, dtype):
    """w: (I, O, K, 2) -> (Wr^T, Wi^T) each (K, O, I) in compute dtype."""
    wr = jnp.transpose(w[..., 0], (2, 1, 0)).astype(dtype)
    wi = jnp.transpose(w[..., 1], (2, 1, 0)).astype(dtype)
    return wr, wi


def _split_pad(ft, p_pad, dtype):
    """ft: (K, I, P) complex -> (Re, Im) each (K, I, p_pad) in compute dtype."""
    xr = jnp.real(ft).astype(dtype)
    xi = jnp.imag(ft).astype(dtype)
    pad = p_pad - ft.shape[-1]
    if pad:
        cfg = ((0, 0), (0, 0), (0, pad))
        xr = jnp.pad(xr, cfg)
        xi = jnp.pad(xi, cfg)
    return xr, xi


def _to_spatial(yr, yi, B, S, n_out):
    """(K, O, Ppad) f32 pair -> real (O, B, S, n_out) via irfft on the mode axis."""
    K, O, _ = yr.shape
    yr = yr[:, :, : B * S].reshape(K, O, B, S)
    yi = yi[:, :, : B * S].reshape(K, O, B, S)
    yc = (jnp.transpose(yr, (1, 2, 3, 0))
          + 1j * jnp.transpose(yi, (1, 2, 3, 0))).astype(jnp.complex64)
    # irfft(n=...) zero-pads the missing high modes — no zeros+scatter needed.
    return jnp.fft.irfft(yc, n=n_out, axis=-1, norm="ortho")


# ----------------------------------------------------------------------------
# FourierLayer forward
# ----------------------------------------------------------------------------
def fourier_layer(x, w_x, w_y, modes_x, modes_y, compute_dtype=jnp.bfloat16):
    """x: (B, N, M, I) f32; w_x: (I, O, modes_x, 2); w_y: (I, O, modes_y, 2).

    Returns (B, M, N, O) f32 — identical semantics to FourierLayer.forward
    (bf16 compute_dtype is a precision/bandwidth trade-off on the MXU operands;
    accumulation is always f32).
    """
    B, N, M, I = x.shape
    O = w_x.shape[1]
    assert modes_x <= M // 2 + 1 and modes_y <= N // 2 + 1

    # ---- branch X: FFT over M (transform axis placed last for XLA's FFT) ----
    x_m_last = jnp.transpose(x, (0, 3, 1, 2))                        # (B, I, N, M)
    ftx = jnp.fft.rfft(x_m_last, axis=-1, norm="ortho")[..., :modes_x]
    ftx = jnp.transpose(ftx, (3, 1, 0, 2)).reshape(modes_x, I, B * N)  # (Kx, I, B*N)

    # ---- branch Y: FFT over N ------------------------------------------------
    x_n_last = jnp.transpose(x, (0, 3, 2, 1))                        # (B, I, M, N)
    fty = jnp.fft.rfft(x_n_last, axis=-1, norm="ortho")[..., :modes_y]
    fty = jnp.transpose(fty, (3, 1, 0, 2)).reshape(modes_y, I, B * M)  # (Ky, I, B*M)

    # ---- pack operands (separate Re/Im, lane-dense padded P, compute dtype) --
    px_pad = _round_up(B * N, 128)
    py_pad = _round_up(B * M, 128)
    xrx, xix = _split_pad(ftx, px_pad, compute_dtype)
    xry, xiy = _split_pad(fty, py_pad, compute_dtype)
    wrx, wix = _pack_weight(w_x, compute_dtype)
    wry, wiy = _pack_weight(w_y, compute_dtype)

    # One pallas_call per branch (fusing them would require an HBM concat of
    # the largest tensors; each call already has a multi-block parallel grid).
    yrx, yix = _mode_mix(wrx, wix, xrx, xix)       # (Kx, O, px_pad) f32
    yry, yiy = _mode_mix(wry, wiy, xry, xiy)       # (Ky, O, py_pad) f32

    # ---- inverse FFTs and recombination in the final layout ------------------
    xx = _to_spatial(yrx, yix, B, N, M)            # (O, B, N, M)
    xy = _to_spatial(yry, yiy, B, M, N)            # (O, B, M, N)
    return jnp.transpose(xx, (1, 3, 2, 0)) + jnp.transpose(xy, (1, 2, 3, 0))


fourier_layer_jit = jax.jit(
    fourier_layer, static_argnames=("modes_x", "modes_y", "compute_dtype"))


# ----------------------------------------------------------------------------
# Pure-JAX reference (mirrors the PyTorch module verbatim) for verification.
# ----------------------------------------------------------------------------
def fourier_layer_ref(x, w_x, w_y, modes_x, modes_y):
    xp = jnp.transpose(x, (0, 3, 2, 1))
    B, I, M, N = xp.shape
    O = w_x.shape[1]
    wxc = (w_x[..., 0] + 1j * w_x[..., 1]).astype(jnp.complex64)   # (I, O, Kx)
    wyc = (w_y[..., 0] + 1j * w_y[..., 1]).astype(jnp.complex64)   # (I, O, Ky)

    x_ftx = jnp.fft.rfft(xp, axis=-2, norm="ortho")
    out_ft = jnp.zeros((B, O, M // 2 + 1, N), dtype=jnp.complex64)
    out_ft = out_ft.at[:, :, :modes_x, :].set(
        jnp.einsum("bixy,iox->boxy", x_ftx[:, :, :modes_x, :], wxc))
    xx = jnp.fft.irfft(out_ft, n=M, axis=-2, norm="ortho")

    x_fty = jnp.fft.rfft(xp, axis=-1, norm="ortho")
    out_ft = jnp.zeros((B, O, M, N // 2 + 1), dtype=jnp.complex64)
    out_ft = out_ft.at[:, :, :, :modes_y].set(
        jnp.einsum("bixy,ioy->boxy", x_fty[:, :, :, :modes_y], wyc))
    xy = jnp.fft.irfft(out_ft, n=N, axis=-1, norm="ortho")

    return jnp.transpose(xx + xy, (0, 2, 3, 1))


# ----------------------------------------------------------------------------
if __name__ == "__main__":
    B, I, O = 2, 4, 4            # in_dim == out_dim (the module implicitly requires it)
    M, N = 16, 16
    modes_x, modes_y = 8, 8

    key = jax.random.PRNGKey(0)
    kx, ky, kd = jax.random.split(key, 3)

    # xavier_normal_ on (I, O, modes, 2): fan_in = I*modes*2, fan_out = O*modes*2
    def xavier(k, shape):
        fan_in = shape[0] * shape[2] * shape[3]
        fan_out = shape[1] * shape[2] * shape[3]
        std = math.sqrt(2.0 / (fan_in + fan_out))
        return std * jax.random.normal(k, shape, dtype=jnp.float32)

    w_x = xavier(kx, (I, O, modes_x, 2))
    w_y = xavier(ky, (I, O, modes_y, 2))

    # input in the module's channels-last layout: (B, N, M, I)
    x = jax.random.normal(kd, (B, N, M, I), dtype=jnp.float32)

    ref = jax.block_until_ready(fourier_layer_ref(x, w_x, w_y, modes_x, modes_y))

    # f32 path: bit-for-bit class of the reference math (tight tolerance).
    out_f32 = jax.block_until_ready(fourier_layer_jit(
        x, w_x, w_y, modes_x=modes_x, modes_y=modes_y, compute_dtype=jnp.float32))
    assert out_f32.shape == (B, M, N, O), out_f32.shape
    assert out_f32.dtype == jnp.float32
    assert jnp.allclose(out_f32, ref, rtol=1e-4, atol=1e-4), \
        float(jnp.max(jnp.abs(out_f32 - ref)))

    # bf16-operand path (default): f32 accumulation, looser tolerance.
    out_bf16 = jax.block_until_ready(fourier_layer_jit(
        x, w_x, w_y, modes_x=modes_x, modes_y=modes_y, compute_dtype=jnp.bfloat16))
    assert out_bf16.shape == (B, M, N, O), out_bf16.shape
    assert jnp.allclose(out_bf16, ref, rtol=3e-2, atol=3e-2), \
        float(jnp.max(jnp.abs(out_bf16 - ref)))

    print("KERNEL_OK")
</pallas_src>

<mosaic_0001>
module attributes {stable_mosaic.version = 11 : i64} {
  func.func @_mode_mix_kernel(%arg0: i32, %arg1: i32, %arg2: memref<4x4x4xf32, #tpu.memory_space<vmem>>, %arg3: memref<4x4x4xf32, #tpu.memory_space<vmem>>, %arg4: memref<4x4x128xf32, #tpu.memory_space<vmem>>, %arg5: memref<4x4x128xf32, #tpu.memory_space<vmem>>, %arg6: memref<4x4x128xf32, #tpu.memory_space<vmem>>, %arg7: memref<4x4x128xf32, #tpu.memory_space<vmem>>) attributes {dimension_semantics = [#tpu.dimension_semantics<parallel>, #tpu.dimension_semantics<parallel>], iteration_bounds = array<i64: 2, 1>, scalar_prefetch = 0 : i64, scratch_operands = 0 : i64, tpu.core_type = #tpu.core_type<tc>, window_params = [{transform_indices = @transform_0, window_bounds = array<i64: 4, 4, 4>}, {transform_indices = @transform_1, window_bounds = array<i64: 4, 4, 4>}, {transform_indices = @transform_2, window_bounds = array<i64: 4, 4, 128>}, {transform_indices = @transform_3, window_bounds = array<i64: 4, 4, 128>}, {transform_indices = @transform_4, window_bounds = array<i64: 4, 4, 128>}, {transform_indices = @transform_5, window_bounds = array<i64: 4, 4, 128>}]} {
    %c0 = arith.constant 0 : index
    %c0_0 = arith.constant 0 : index
    %c0_1 = arith.constant 0 : index
    %0 = vector.load %arg2[%c0, %c0_0, %c0_1] : memref<4x4x4xf32, #tpu.memory_space<vmem>>, vector<4x4x4xf32>
    %c0_2 = arith.constant 0 : index
    %c0_3 = arith.constant 0 : index
    %c0_4 = arith.constant 0 : index
    %1 = vector.load %arg3[%c0_2, %c0_3, %c0_4] : memref<4x4x4xf32, #tpu.memory_space<vmem>>, vector<4x4x4xf32>
    %c0_5 = arith.constant 0 : index
    %c0_6 = arith.constant 0 : index
    %c0_7 = arith.constant 0 : index
    %2 = vector.load %arg4[%c0_5, %c0_6, %c0_7] : memref<4x4x128xf32, #tpu.memory_space<vmem>>, vector<4x4x128xf32>
    %c0_8 = arith.constant 0 : index
    %c0_9 = arith.constant 0 : index
    %c0_10 = arith.constant 0 : index
    %3 = vector.load %arg5[%c0_8, %c0_9, %c0_10] : memref<4x4x128xf32, #tpu.memory_space<vmem>>, vector<4x4x128xf32>
    %cst = arith.constant dense<0.000000e+00> : vector<4x4x128xf32>
    %4 = tpu.matmul %0, %2, %cst {dimension_numbers = #tpu.dot_dimension_numbers<[2], [1], [1], [2], [0, 0, 0, 1, 1, 2], [0], [0]>} : vector<4x4x4xf32>, vector<4x4x128xf32>, vector<4x4x128xf32> -> vector<4x4x128xf32>
    %cst_11 = arith.constant dense<0.000000e+00> : vector<4x4x128xf32>
    %5 = tpu.matmul %1, %3, %cst_11 {dimension_numbers = #tpu.dot_dimension_numbers<[2], [1], [1], [2], [0, 0, 0, 1, 1, 2], [0], [0]>} : vector<4x4x4xf32>, vector<4x4x128xf32>, vector<4x4x128xf32> -> vector<4x4x128xf32>
    %cst_12 = arith.constant dense<0.000000e+00> : vector<4x4x128xf32>
    %6 = tpu.matmul %1, %2, %cst_12 {dimension_numbers = #tpu.dot_dimension_numbers<[2], [1], [1], [2], [0, 0, 0, 1, 1, 2], [0], [0]>} : vector<4x4x4xf32>, vector<4x4x128xf32>, vector<4x4x128xf32> -> vector<4x4x128xf32>
    %cst_13 = arith.constant dense<0.000000e+00> : vector<4x4x128xf32>
    %7 = tpu.matmul %0, %3, %cst_13 {dimension_numbers = #tpu.dot_dimension_numbers<[2], [1], [1], [2], [0, 0, 0, 1, 1, 2], [0], [0]>} : vector<4x4x4xf32>, vector<4x4x128xf32>, vector<4x4x128xf32> -> vector<4x4x128xf32>
    %8 = arith.subf %4, %5 : vector<4x4x128xf32>
    %c0_14 = arith.constant 0 : index
    %c0_15 = arith.constant 0 : index
    %c0_16 = arith.constant 0 : index
    %9 = vector.load %arg6[%c0_14, %c0_15, %c0_16] : memref<4x4x128xf32, #tpu.memory_space<vmem>>, vector<4x4x128xf32>
    tpu.vector_store %arg6[%c0_14, %c0_15, %c0_16], %8 {strides = array<i32>} : memref<4x4x128xf32, #tpu.memory_space<vmem>>, vector<4x4x128xf32>,
    %10 = arith.addf %6, %7 : vector<4x4x128xf32>
    %c0_17 = arith.constant 0 : index
    %c0_18 = arith.constant 0 : index
    %c0_19 = arith.constant 0 : index
    %11 = vector.load %arg7[%c0_17, %c0_18, %c0_19] : memref<4x4x128xf32, #tpu.memory_space<vmem>>, vector<4x4x128xf32>
    tpu.vector_store %arg7[%c0_17, %c0_18, %c0_19], %10 {strides = array<i32>} : memref<4x4x128xf32, #tpu.memory_space<vmem>>, vector<4x4x128xf32>,
    return
  }
  func.func @transform_0(%arg0: i32, %arg1: i32) -> (i32, i32, i32) {
    %c0_i32 = arith.constant 0 : i32
    %c0_i32_0 = arith.constant 0 : i32
    %c0_i32_1 = arith.constant 0 : i32
    return %arg0, %c0_i32, %c0_i32_0 : i32, i32, i32
  }
  func.func @transform_1(%arg0: i32, %arg1: i32) -> (i32, i32, i32) {
    %c0_i32 = arith.constant 0 : i32
    %c0_i32_0 = arith.constant 0 : i32
    %c0_i32_1 = arith.constant 0 : i32
    return %arg0, %c0_i32, %c0_i32_0 : i32, i32, i32
  }
  func.func @transform_2(%arg0: i32, %arg1: i32) -> (i32, i32, i32) {
    %c0_i32 = arith.constant 0 : i32
    %c0_i32_0 = arith.constant 0 : i32
    return %arg0, %c0_i32, %arg1 : i32, i32, i32
  }
  func.func @transform_3(%arg0: i32, %arg1: i32) -> (i32, i32, i32) {
    %c0_i32 = arith.constant 0 : i32
    %c0_i32_0 = arith.constant 0 : i32
    return %arg0, %c0_i32, %arg1 : i32, i32, i32
  }
  func.func @transform_4(%arg0: i32, %arg1: i32) -> (i32, i32, i32) {
    %c0_i32 = arith.constant 0 : i32
    %c0_i32_0 = arith.constant 0 : i32
    return %arg0, %c0_i32, %arg1 : i32, i32, i32
  }
  func.func @transform_5(%arg0: i32, %arg1: i32) -> (i32, i32, i32) {
    %c0_i32 = arith.constant 0 : i32
    %c0_i32_0 = arith.constant 0 : i32
    return %arg0, %c0_i32, %arg1 : i32, i32, i32
  }
}

</mosaic_0001>

<llo_original>
// kernel: reverse.4
$region0: #{reverse.4}
  %s0 = inlined_call_operand.vmem [shape: f32[4,2,16,7], index: 0, kind: input, shape index: {}]
  %s1 = inlined_call_operand.vmem [shape: f32[4,2,16,7], index: 1, kind: output, shape index: {}]
  %v2 = vlaneseq
  %v3 = vsub.s32 6, %v2
  %4 = vset.pattern.permute.xlu0 %v3
  $region1: #{reverse.4} parent=0
    #allocation0 [shape = 'u8[65536]{0}', space=vmem, size = 0x10000, scoped, tag = 'operand span for operand 0']
    #allocation1 [shape = 'u8[65536]{0}', space=vmem, size = 0x10000, scoped, tag = 'operand span for operand 1']
    // Predicated region
    $region2: #{reverse.4} parent=1 // pred_check
      _
    $region3: #{reverse.4} parent=1 // pred_check_branch
      %6 = sbr.rel (0) target = $region5
    $region4: #{reverse.4} parent=1 // pred_region
      // Predicated region
      $region6: #{reverse.4} parent=4 // pred_check
        _
      $region7: #{reverse.4} parent=4 // pred_check_branch
        %8 = sbr.rel (0) target = $region9
      $region8: #{reverse.4} parent=4 // pred_region
        // Predicated region
        $region21: #{reverse.4} parent=8 // pred_check
          _
        $region22: #{reverse.4} parent=8 // pred_check_branch
          %53 = sbr.rel (0) target = $region24
        $region23: #{reverse.4} parent=8 // pred_region
          loop: start=0, step=1, limit=1
          $region25: #{reverse.4} parent=23 // loop_pre_header
            _
          $region26: #{reverse.4} parent=23 // loop_header
            %s55 = sphi 0, %s59
            %p56 = scmp.ge.s32.totalorder %s55, 1
            %s60 = sphi %s0, %s0
            %s61 = sphi [#allocation0], [#allocation0]
          $region27: #{reverse.4} parent=23 // loop_header_branch
            %58 = sbr.rel (%p56) target = $region31
          $region28: #{reverse.4} parent=23 // loop_body
            %v62 = vld [vmem:[%s60] sm:$0xff]
            %63 = vst [vmem:[%s61] sm:$0xff] %v62
            %v64 = vld [vmem:[%s60 + $0x8] sm:$0xff]
            %65 = vst [vmem:[%s61 + $0x8] sm:$0xff] %v64
            %v66 = vld [vmem:[%s60 + $0x10] sm:$0xff]
            %67 = vst [vmem:[%s61 + $0x10] sm:$0xff] %v66
            %v68 = vld [vmem:[%s60 + $0x18] sm:$0xff]
            %69 = vst [vmem:[%s61 + $0x18] sm:$0xff] %v68
            %v70 = vld [vmem:[%s60 + $0x20] sm:$0xff]
            %71 = vst [vmem:[%s61 + $0x20] sm:$0xff] %v70
            %v72 = vld [vmem:[%s60 + $0x28] sm:$0xff]
            %73 = vst [vmem:[%s61 + $0x28] sm:$0xff] %v72
            %v74 = vld [vmem:[%s60 + $0x30] sm:$0xff]
            %75 = vst [vmem:[%s61 + $0x30] sm:$0xff] %v74
            %v76 = vld [vmem:[%s60 + $0x38] sm:$0xff]
            %77 = vst [vmem:[%s61 + $0x38] sm:$0xff] %v76
            %v78 = vld [vmem:[%s60 + $0x40] sm:$0xff]
            %79 = vst [vmem:[%s61 + $0x40] sm:$0xff] %v78
            %v80 = vld [vmem:[%s60 + $0x48] sm:$0xff]
            %81 = vst [vmem:[%s61 + $0x48] sm:$0xff] %v80
            %v82 = vld [vmem:[%s60 + $0x50] sm:$0xff]
            %83 = vst [vmem:[%s61 + $0x50] sm:$0xff] %v82
            %v84 = vld [vmem:[%s60 + $0x58] sm:$0xff]
            %85 = vst [vmem:[%s61 + $0x58] sm:$0xff] %v84
            %v86 = vld [vmem:[%s60 + $0x60] sm:$0xff]
            %87 = vst [vmem:[%s61 + $0x60] sm:$0xff] %v86
            %v88 = vld [vmem:[%s60 + $0x68] sm:$0xff]
            %89 = vst [vmem:[%s61 + $0x68] sm:$0xff] %v88
            %v90 = vld [vmem:[%s60 + $0x70] sm:$0xff]
            %91 = vst [vmem:[%s61 + $0x70] sm:$0xff] %v90
            %v92 = vld [vmem:[%s60 + $0x78] sm:$0xff]
            %93 = vst [vmem:[%s61 + $0x78] sm:$0xff] %v92
          $region29: #{reverse.4} parent=23 // loop_footer
            %s59 = sadd.s32 1, %s55
          $region30: #{reverse.4} parent=23 // loop_footer_branch
            %54 = sbr.rel target = $region26
          $region31: #{reverse.4} parent=23 // loop_exit
            _
        $region24: #{reverse.4} parent=8 // pred_fallthru
          _
        // Predicated region
        $region32: #{reverse.4} parent=8 // pred_check
          _
        $region33: #{reverse.4} parent=8 // pred_check_branch
          %95 = sbr.rel target = $region35
        $region34: #{reverse.4} parent=8 // pred_region
          _
        $region35: #{reverse.4} parent=8 // pred_fallthru
          _
      $region9: #{reverse.4} parent=4 // pred_fallthru
        _
      // Predicated region
      $region10: #{reverse.4} parent=4 // pred_check
        _
      $region11: #{reverse.4} parent=4 // pred_check_branch
        %10 = sbr.rel target = $region13
      $region12: #{reverse.4} parent=4 // pred_region
        loop: start=0, step=1, limit=1
        $region14: #{reverse.4} parent=12 // loop_pre_header
          _
        $region15: #{reverse.4} parent=12 // loop_header
          %s13 = sphi 0, %s17
          %p14 = scmp.ge.s32.totalorder %s13, 1
          %s18 = sphi %s0, %s0
          %s19 = sphi [#allocation0], [#allocation0]
        $region16: #{reverse.4} parent=12 // loop_header_branch
          %16 = sbr.rel (%p14) target = $region20
        $region17: #{reverse.4} parent=12 // loop_body
          %v20 = vld [vmem:[%s18] sm:$0xff]
          %21 = vst [vmem:[%s19] sm:$0xff] %v20
          %v22 = vld [vmem:[%s18 + $0x8] sm:$0xff]
          %23 = vst [vmem:[%s19 + $0x8] sm:$0xff] %v22
          %v24 = vld [vmem:[%s18 + $0x10] sm:$0xff]
          %25 = vst [vmem:[%s19 + $0x10] sm:$0xff] %v24
          %v26 = vld [vmem:[%s18 + $0x18] sm:$0xff]
          %27 = vst [vmem:[%s19 + $0x18] sm:$0xff] %v26
          %v28 = vld [vmem:[%s18 + $0x20] sm:$0xff]
          %29 = vst [vmem:[%s19 + $0x20] sm:$0xff] %v28
          %v30 = vld [vmem:[%s18 + $0x28] sm:$0xff]
          %31 = vst [vmem:[%s19 + $0x28] sm:$0xff] %v30
          %v32 = vld [vmem:[%s18 + $0x30] sm:$0xff]
          %33 = vst [vmem:[%s19 + $0x30] sm:$0xff] %v32
          %v34 = vld [vmem:[%s18 + $0x38] sm:$0xff]
          %35 = vst [vmem:[%s19 + $0x38] sm:$0xff] %v34
          %v36 = vld [vmem:[%s18 + $0x40] sm:$0xff]
          %37 = vst [vmem:[%s19 + $0x40] sm:$0xff] %v36
          %v38 = vld [vmem:[%s18 + $0x48] sm:$0xff]
          %39 = vst [vmem:[%s19 + $0x48] sm:$0xff] %v38
          %v40 = vld [vmem:[%s18 + $0x50] sm:$0xff]
          %41 = vst [vmem:[%s19 + $0x50] sm:$0xff] %v40
          %v42 = vld [vmem:[%s18 + $0x58] sm:$0xff]
          %43 = vst [vmem:[%s19 + $0x58] sm:$0xff] %v42
          %v44 = vld [vmem:[%s18 + $0x60] sm:$0xff]
          %45 = vst [vmem:[%s19 + $0x60] sm:$0xff] %v44
          %v46 = vld [vmem:[%s18 + $0x68] sm:$0xff]
          %47 = vst [vmem:[%s19 + $0x68] sm:$0xff] %v46
          %v48 = vld [vmem:[%s18 + $0x70] sm:$0xff]
          %49 = vst [vmem:[%s19 + $0x70] sm:$0xff] %v48
          %v50 = vld [vmem:[%s18 + $0x78] sm:$0xff]
          %51 = vst [vmem:[%s19 + $0x78] sm:$0xff] %v50
        $region18: #{reverse.4} parent=12 // loop_footer
          %s17 = sadd.s32 1, %s13
        $region19: #{reverse.4} parent=12 // loop_footer_branch
          %12 = sbr.rel target = $region15
        $region20: #{reverse.4} parent=12 // loop_exit
          _
      $region13: #{reverse.4} parent=4 // pred_fallthru
        _
    $region5: #{reverse.4} parent=1 // pred_fallthru
      _
    %96 = vnop
    %v97 = vld [vmem:[#allocation0] sm:$0xff]
    %98 = vperm.xlu0 %4, %v97
    %v99 = vpop.permute.xlu0 %98
    %100 = vst [vmem:[#allocation1] sm:$0xff] %v99
    %s101 = scalar_lea.vmem [#allocation1], 8
    %s102 = scalar_lea.vmem [#allocation0], 8
    %v103 = vld [vmem:[%s102] sm:$0xff]
    %104 = vperm.xlu0 %4, %v103
    %v105 = vpop.permute.xlu0 %104
    %106 = vst [vmem:[%s101] sm:$0xff] %v105
    %s107 = scalar_lea.vmem [#allocation1], 16
    %s108 = scalar_lea.vmem [#allocation0], 16
    %v109 = vld [vmem:[%s108] sm:$0xff]
    %110 = vperm.xlu0 %4, %v109
    %v111 = vpop.permute.xlu0 %110
    %112 = vst [vmem:[%s107] sm:$0xff] %v111
    %s113 = scalar_lea.vmem %s107, 8 [#allocation1]
    %s114 = scalar_lea.vmem %s108, 8 [#allocation0]
    %v115 = vld [vmem:[%s114] sm:$0xff]
    %116 = vperm.xlu0 %4, %v115
    %v117 = vpop.permute.xlu0 %116
    %118 = vst [vmem:[%s113] sm:$0xff] %v117
    %s119 = scalar_lea.vmem [#allocation1], 32
    %s120 = scalar_lea.vmem [#allocation0], 32
    %v121 = vld [vmem:[%s120] sm:$0xff]
    %122 = vperm.xlu0 %4, %v121
    %v123 = vpop.permute.xlu0 %122
    %124 = vst [vmem:[%s119] sm:$0xff] %v123
    %s125 = scalar_lea.vmem %s119, 8 [#allocation1]
    %s126 = scalar_lea.vmem %s120, 8 [#allocation0]
    %v127 = vld [vmem:[%s126] sm:$0xff]
    %128 = vperm.xlu0 %4, %v127
    %v129 = vpop.permute.xlu0 %128
    %130 = vst [vmem:[%s125] sm:$0xff] %v129
    %s131 = scalar_lea.vmem [#allocation1], 48
    %s132 = scalar_lea.vmem [#allocation0], 48
    %v133 = vld [vmem:[%s132] sm:$0xff]
    %134 = vperm.xlu0 %4, %v133
    %v135 = vpop.permute.xlu0 %134
    %136 = vst [vmem:[%s131] sm:$0xff] %v135
    %s137 = scalar_lea.vmem %s131, 8 [#allocation1]
    %s138 = scalar_lea.vmem %s132, 8 [#allocation0]
    %v139 = vld [vmem:[%s138] sm:$0xff]
    %140 = vperm.xlu0 %4, %v139
    %v141 = vpop.permute.xlu0 %140
    %142 = vst [vmem:[%s137] sm:$0xff] %v141
    %s143 = scalar_lea.vmem [#allocation1], 64
    %s144 = scalar_lea.vmem [#allocation0], 64
    %v145 = vld [vmem:[%s144] sm:$0xff]
    %146 = vperm.xlu0 %4, %v145
    %v147 = vpop.permute.xlu0 %146
    %148 = vst [vmem:[%s143] sm:$0xff] %v147
    %s149 = scalar_lea.vmem %s143, 8 [#allocation1]
    %s150 = scalar_lea.vmem %s144, 8 [#allocation0]
    %v151 = vld [vmem:[%s150] sm:$0xff]
    %152 = vperm.xlu0 %4, %v151
    %v153 = vpop.permute.xlu0 %152
    %154 = vst [vmem:[%s149] sm:$0xff] %v153
    %s155 = scalar_lea.vmem [#allocation1], 80
    %s156 = scalar_lea.vmem [#allocation0], 80
    %v157 = vld [vmem:[%s156] sm:$0xff]
    %158 = vperm.xlu0 %4, %v157
    %v159 = vpop.permute.xlu0 %158
    %160 = vst [vmem:[%s155] sm:$0xff] %v159
    %s161 = scalar_lea.vmem %s155, 8 [#allocation1]
    %s162 = scalar_lea.vmem %s156, 8 [#allocation0]
    %v163 = vld [vmem:[%s162] sm:$0xff]
    %164 = vperm.xlu0 %4, %v163
    %v165 = vpop.permute.xlu0 %164
    %166 = vst [vmem:[%s161] sm:$0xff] %v165
    %s167 = scalar_lea.vmem [#allocation1], 96
    %s168 = scalar_lea.vmem [#allocation0], 96
    %v169 = vld [vmem:[%s168] sm:$0xff]
    %170 = vperm.xlu0 %4, %v169
    %v171 = vpop.permute.xlu0 %170
    %172 = vst [vmem:[%s167] sm:$0xff] %v171
    %s173 = scalar_lea.vmem %s167, 8 [#allocation1]
    %s174 = scalar_lea.vmem %s168, 8 [#allocation0]
    %v175 = vld [vmem:[%s174] sm:$0xff]
    %176 = vperm.xlu0 %4, %v175
    %v177 = vpop.permute.xlu0 %176
    %178 = vst [vmem:[%s173] sm:$0xff] %v177
    %s179 = scalar_lea.vmem [#allocation1], 112
    %s180 = scalar_lea.vmem [#allocation0], 112
    %v181 = vld [vmem:[%s180] sm:$0xff]
    %182 = vperm.xlu0 %4, %v181
    %v183 = vpop.permute.xlu0 %182
    %184 = vst [vmem:[%s179] sm:$0xff] %v183
    %s185 = scalar_lea.vmem %s179, 8 [#allocation1]
    %s186 = scalar_lea.vmem %s180, 8 [#allocation0]
    %v187 = vld [vmem:[%s186] sm:$0xff]
    %188 = vperm.xlu0 %4, %v187
    %v189 = vpop.permute.xlu0 %188
    %190 = vst [vmem:[%s185] sm:$0xff] %v189
    // Predicated region
    $region36: #{reverse.4} parent=1 // pred_check
      _
    $region37: #{reverse.4} parent=1 // pred_check_branch
      %192 = sbr.rel (0) target = $region39
    $region38: #{reverse.4} parent=1 // pred_region
      // Predicated region
      $region40: #{reverse.4} parent=38 // pred_check
        _
      $region41: #{reverse.4} parent=38 // pred_check_branch
        %194 = sbr.rel (0) target = $region43
      $region42: #{reverse.4} parent=38 // pred_region
        // Predicated region
        $region55: #{reverse.4} parent=42 // pred_check
          _
        $region56: #{reverse.4} parent=42 // pred_check_branch
          %239 = sbr.rel (0) target = $region58
        $region57: #{reverse.4} parent=42 // pred_region
          loop: start=0, step=1, limit=1
          $region59: #{reverse.4} parent=57 // loop_pre_header
            _
          $region60: #{reverse.4} parent=57 // loop_header
            %s241 = sphi 0, %s245
            %p242 = scmp.ge.s32.totalorder %s241, 1
            %s246 = sphi [#allocation1], [#allocation1]
            %s247 = sphi %s1, %s1
          $region61: #{reverse.4} parent=57 // loop_header_branch
            %244 = sbr.rel (%p242) target = $region65
          $region62: #{reverse.4} parent=57 // loop_body
            %v248 = vld [vmem:[%s246] sm:$0xff]
            %249 = vst [vmem:[%s247] sm:$0xff] %v248
            %v250 = vld [vmem:[%s246 + $0x8] sm:$0xff]
            %251 = vst [vmem:[%s247 + $0x8] sm:$0xff] %v250
            %v252 = vld [vmem:[%s246 + $0x10] sm:$0xff]
            %253 = vst [vmem:[%s247 + $0x10] sm:$0xff] %v252
            %v254 = vld [vmem:[%s246 + $0x18] sm:$0xff]
            %255 = vst [vmem:[%s247 + $0x18] sm:$0xff] %v254
            %v256 = vld [vmem:[%s246 + $0x20] sm:$0xff]
            %257 = vst [vmem:[%s247 + $0x20] sm:$0xff] %v256
            %v258 = vld [vmem:[%s246 + $0x28] sm:$0xff]
            %259 = vst [vmem:[%s247 + $0x28] sm:$0xff] %v258
            %v260 = vld [vmem:[%s246 + $0x30] sm:$0xff]
            %261 = vst [vmem:[%s247 + $0x30] sm:$0xff] %v260
            %v262 = vld [vmem:[%s246 + $0x38] sm:$0xff]
            %263 = vst [vmem:[%s247 + $0x38] sm:$0xff] %v262
            %v264 = vld [vmem:[%s246 + $0x40] sm:$0xff]
            %265 = vst [vmem:[%s247 + $0x40] sm:$0xff] %v264
            %v266 = vld [vmem:[%s246 + $0x48] sm:$0xff]
            %267 = vst [vmem:[%s247 + $0x48] sm:$0xff] %v266
            %v268 = vld [vmem:[%s246 + $0x50] sm:$0xff]
            %269 = vst [vmem:[%s247 + $0x50] sm:$0xff] %v268
            %v270 = vld [vmem:[%s246 + $0x58] sm:$0xff]
            %271 = vst [vmem:[%s247 + $0x58] sm:$0xff] %v270
            %v272 = vld [vmem:[%s246 + $0x60] sm:$0xff]
            %273 = vst [vmem:[%s247 + $0x60] sm:$0xff] %v272
            %v274 = vld [vmem:[%s246 + $0x68] sm:$0xff]
            %275 = vst [vmem:[%s247 + $0x68] sm:$0xff] %v274
            %v276 = vld [vmem:[%s246 + $0x70] sm:$0xff]
            %277 = vst [vmem:[%s247 + $0x70] sm:$0xff] %v276
            %v278 = vld [vmem:[%s246 + $0x78] sm:$0xff]
            %279 = vst [vmem:[%s247 + $0x78] sm:$0xff] %v278
          $region63: #{reverse.4} parent=57 // loop_footer
            %s245 = sadd.s32 1, %s241
          $region64: #{reverse.4} parent=57 // loop_footer_branch
            %240 = sbr.rel target = $region60
          $region65: #{reverse.4} parent=57 // loop_exit
            _
        $region58: #{reverse.4} parent=42 // pred_fallthru
          _
        // Predicated region
        $region66: #{reverse.4} parent=42 // pred_check
          _
        $region67: #{reverse.4} parent=42 // pred_check_branch
          %281 = sbr.rel target = $region69
        $region68: #{reverse.4} parent=42 // pred_region
          _
        $region69: #{reverse.4} parent=42 // pred_fallthru
          _
      $region43: #{reverse.4} parent=38 // pred_fallthru
        _
      // Predicated region
      $region44: #{reverse.4} parent=38 // pred_check
        _
      $region45: #{reverse.4} parent=38 // pred_check_branch
        %196 = sbr.rel target = $region47
      $region46: #{reverse.4} parent=38 // pred_region
        loop: start=0, step=1, limit=1
        $region48: #{reverse.4} parent=46 // loop_pre_header
          _
        $region49: #{reverse.4} parent=46 // loop_header
          %s199 = sphi 0, %s203
          %p200 = scmp.ge.s32.totalorder %s199, 1
          %s204 = sphi [#allocation1], [#allocation1]
          %s205 = sphi %s1, %s1
        $region50: #{reverse.4} parent=46 // loop_header_branch
          %202 = sbr.rel (%p200) target = $region54
        $region51: #{reverse.4} parent=46 // loop_body
          %v206 = vld [vmem:[%s204] sm:$0xff]
          %207 = vst [vmem:[%s205] sm:$0xff] %v206
          %v208 = vld [vmem:[%s204 + $0x8] sm:$0xff]
          %209 = vst [vmem:[%s205 + $0x8] sm:$0xff] %v208
          %v210 = vld [vmem:[%s204 + $0x10] sm:$0xff]
          %211 = vst [vmem:[%s205 + $0x10] sm:$0xff] %v210
          %v212 = vld [vmem:[%s204 + $0x18] sm:$0xff]
          %213 = vst [vmem:[%s205 + $0x18] sm:$0xff] %v212
          %v214 = vld [vmem:[%s204 + $0x20] sm:$0xff]
          %215 = vst [vmem:[%s205 + $0x20] sm:$0xff] %v214
          %v216 = vld [vmem:[%s204 + $0x28] sm:$0xff]
          %217 = vst [vmem:[%s205 + $0x28] sm:$0xff] %v216
          %v218 = vld [vmem:[%s204 + $0x30] sm:$0xff]
          %219 = vst [vmem:[%s205 + $0x30] sm:$0xff] %v218
          %v220 = vld [vmem:[%s204 + $0x38] sm:$0xff]
          %221 = vst [vmem:[%s205 + $0x38] sm:$0xff] %v220
          %v222 = vld [vmem:[%s204 + $0x40] sm:$0xff]
          %223 = vst [vmem:[%s205 + $0x40] sm:$0xff] %v222
          %v224 = vld [vmem:[%s204 + $0x48] sm:$0xff]
          %225 = vst [vmem:[%s205 + $0x48] sm:$0xff] %v224
          %v226 = vld [vmem:[%s204 + $0x50] sm:$0xff]
          %227 = vst [vmem:[%s205 + $0x50] sm:$0xff] %v226
          %v228 = vld [vmem:[%s204 + $0x58] sm:$0xff]
          %229 = vst [vmem:[%s205 + $0x58] sm:$0xff] %v228
          %v230 = vld [vmem:[%s204 + $0x60] sm:$0xff]
          %231 = vst [vmem:[%s205 + $0x60] sm:$0xff] %v230
          %v232 = vld [vmem:[%s204 + $0x68] sm:$0xff]
          %233 = vst [vmem:[%s205 + $0x68] sm:$0xff] %v232
          %v234 = vld [vmem:[%s204 + $0x70] sm:$0xff]
          %235 = vst [vmem:[%s205 + $0x70] sm:$0xff] %v234
          %v236 = vld [vmem:[%s204 + $0x78] sm:$0xff]
          %237 = vst [vmem:[%s205 + $0x78] sm:$0xff] %v236
        $region52: #{reverse.4} parent=46 // loop_footer
          %s203 = sadd.s32 1, %s199
        $region53: #{reverse.4} parent=46 // loop_footer_branch
          %198 = sbr.rel target = $region49
        $region54: #{reverse.4} parent=46 // loop_exit
          _
      $region47: #{reverse.4} parent=38 // pred_fallthru
        _
    $region39: #{reverse.4} parent=1 // pred_fallthru
      _
    %282 = vnop

// kernel: fourier_layer.2
$region0: #{fourier_layer.2}
  #allocation0 [shape = 'u32[]', space=smem, size = 0x4, offset = 0x4, fixed_abs, tag = 'smem constant byte address 0x4 - core index']
  #allocation1 [shape = 'u32[144,128]{1,0:T(1,128)}', space=vmem, size = 0x12000, scoped, tag = 'internal scratch']
  %s0 = inlined_call_operand.vmem [shape: f32[8,4,4], index: 0, kind: input, shape index: {}]
  %s1 = inlined_call_operand.vmem [shape: f32[8,4,4], index: 1, kind: input, shape index: {}]
  %s2 = inlined_call_operand.vmem [shape: f32[8,4,128], index: 2, kind: input, shape index: {}]
  %s3 = inlined_call_operand.vmem [shape: f32[8,4,128], index: 3, kind: input, shape index: {}]
  %s4 = inlined_call_operand.vmem [shape: f32[8,4,128], index: 4, kind: output, shape index: {0}]
  %s5 = inlined_call_operand.vmem [shape: f32[8,4,128], index: 5, kind: output, shape index: {1}]
  %6 = xla_tuple %s4, %s5
  %s7 = sld [smem:[#allocation0]]
  $region57: #{fourier_layer.2} parent=0
    _
  %s9 = ssub.s32 1, %s7
  %s10 = scalar_select 0, %s9, %s7
  loop: start=0, step=1, limit=4
  $region2: #{fourier_layer.2} parent=0 // loop_pre_header
    _
  $region3: #{fourier_layer.2} parent=0 // loop_header
    %s12 = sphi 0, %s16
    %p13 = scmp.ge.s32.totalorder %s12, 4
    %s19 = sphi 0, %s31
    %s20 = sphi 0, %s27
    %s21 = sphi 0, %s19
    %s22 = sphi 0, %s20
    %s23 = sphi 0, %s21
    %s24 = sphi 0, %s22
    %s34 = sphi 0, %s36
    %s37 = sphi 0, %s34
    %s38 = sphi 0, %s37
    %s54 = sphi 0, %s38
    %s60 = sphi 0, %s62
    %s63 = sphi 0, %s60
    %s64 = sphi 0, %s63
    %s80 = sphi 0, %s64
    %s88 = sphi 0, %s90
    %s91 = sphi 0, %s88
    %s92 = sphi 0, %s91
    %s108 = sphi 0, %s92
    %s116 = sphi 0, %s118
    %s119 = sphi 0, %s116
    %s120 = sphi 0, %s119
    %s136 = sphi 0, %s120
    %s144 = sphi 0, %s146
    %s147 = sphi 0, %s144
    %s148 = sphi 0, %s147
    %s164 = sphi 0, %s148
    %s172 = sphi 0, %s174
    %s175 = sphi 0, %s172
    %s176 = sphi 0, %s175
    %s192 = sphi 0, %s176
  $region4: #{fourier_layer.2} parent=0 // loop_header_branch
    %15 = sbr.rel (%p13) target = $region8
  $region5: #{fourier_layer.2} parent=0 // loop_body
    %s17 = ssub.s32 %s12, 1
    %s18 = ssub.s32 %s12, 2
    %s25 = sadd.s32 1, %s20
    %p26 = scmp.ge.s32.totalorder %s25, 1
    %s27 = scalar_select %p26, 0, %s25
    %s28 = sadd.s32 1, %s19
    %s29 = scalar_select %p26, %s28, %s19
    %p30 = scmp.ge.s32.totalorder %s29, 2
    %s31 = scalar_select %p30, 0, %s29
    %s32 = ssub.s32 %s19, %s31
    %p33 = scmp.eq.s32.totalorder %s32, 0
    %s35 = sadd.s32 %s34, 1
    %s36 = scalar_select %p33, %s34, %s35
    %p39 = pneg %p33
    %p40 = scmp.eq.s32.totalorder %s12, 1
    %p41 = por %p39, %p40
    %p42 = scmp.ne.s32.totalorder %s34, %s37
    %p43 = scmp.eq.s32.totalorder %s12, 0
    %p44 = por %p42, %p43
    %p45 = scmp.ne.s32.totalorder %s34, %s37
    %p46 = scmp.eq.s32.totalorder %s17, 1
    %p47 = por %p45, %p46
    %p48 = scmp.ne.s32.totalorder %s37, %s38
    %p49 = scmp.eq.s32.totalorder %s17, 0
    %p50 = por %p48, %p49
    %p51 = scmp.ne.s32.totalorder %s37, %s38
    %p52 = scmp.eq.s32.totalorder %s18, 1
    %p53 = por %p51, %p52
    %p55 = scmp.ne.s32.totalorder %s38, %s54
    %p56 = scmp.eq.s32.totalorder %s18, 0
    %p57 = por %p55, %p56
    %s58 = ssub.s32 %s19, %s31
    %p59 = scmp.eq.s32.totalorder %s58, 0
    %s61 = sadd.s32 %s60, 1
    %s62 = scalar_select %p59, %s60, %s61
    %p65 = pneg %p59
    %p66 = scmp.eq.s32.totalorder %s12, 1
    %p67 = por %p65, %p66
    %p68 = scmp.ne.s32.totalorder %s60, %s63
    %p69 = scmp.eq.s32.totalorder %s12, 0
    %p70 = por %p68, %p69
    %p71 = scmp.ne.s32.totalorder %s60, %s63
    %p72 = scmp.eq.s32.totalorder %s17, 1
    %p73 = por %p71, %p72
    %p74 = scmp.ne.s32.totalorder %s63, %s64
    %p75 = scmp.eq.s32.totalorder %s17, 0
    %p76 = por %p74, %p75
    %p77 = scmp.ne.s32.totalorder %s63, %s64
    %p78 = scmp.eq.s32.totalorder %s18, 1
    %p79 = por %p77, %p78
    %p81 = scmp.ne.s32.totalorder %s64, %s80
    %p82 = scmp.eq.s32.totalorder %s18, 0
    %p83 = por %p81, %p82
    %s84 = ssub.s32 %s19, %s31
    %s85 = ssub.s32 %s20, %s27
    %s86 = sor.u32 %s84, %s85
    %p87 = scmp.eq.s32.totalorder %s86, 0
    %s89 = sadd.s32 %s88, 1
    %s90 = scalar_select %p87, %s88, %s89
    %p93 = pneg %p87
    %p94 = scmp.eq.s32.totalorder %s12, 1
    %p95 = por %p93, %p94
    %p96 = scmp.ne.s32.totalorder %s88, %s91
    %p97 = scmp.eq.s32.totalorder %s12, 0
    %p98 = por %p96, %p97
    %p99 = scmp.ne.s32.totalorder %s88, %s91
    %p100 = scmp.eq.s32.totalorder %s17, 1
    %p101 = por %p99, %p100
    %p102 = scmp.ne.s32.totalorder %s91, %s92
    %p103 = scmp.eq.s32.totalorder %s17, 0
    %p104 = por %p102, %p103
    %p105 = scmp.ne.s32.totalorder %s91, %s92
    %p106 = scmp.eq.s32.totalorder %s18, 1
    %p107 = por %p105, %p106
    %p109 = scmp.ne.s32.totalorder %s92, %s108
    %p110 = scmp.eq.s32.totalorder %s18, 0
    %p111 = por %p109, %p110
    %s112 = ssub.s32 %s19, %s31
    %s113 = ssub.s32 %s20, %s27
    %s114 = sor.u32 %s112, %s113
    %p115 = scmp.eq.s32.totalorder %s114, 0
    %s117 = sadd.s32 %s116, 1
    %s118 = scalar_select %p115, %s116, %s117
    %p121 = pneg %p115
    %p122 = scmp.eq.s32.totalorder %s12, 1
    %p123 = por %p121, %p122
    %p124 = scmp.ne.s32.totalorder %s116, %s119
    %p125 = scmp.eq.s32.totalorder %s12, 0
    %p126 = por %p124, %p125
    %p127 = scmp.ne.s32.totalorder %s116, %s119
    %p128 = scmp.eq.s32.totalorder %s17, 1
    %p129 = por %p127, %p128
    %p130 = scmp.ne.s32.totalorder %s119, %s120
    %p131 = scmp.eq.s32.totalorder %s17, 0
    %p132 = por %p130, %p131
    %p133 = scmp.ne.s32.totalorder %s119, %s120
    %p134 = scmp.eq.s32.totalorder %s18, 1
    %p135 = por %p133, %p134
    %p137 = scmp.ne.s32.totalorder %s120, %s136
    %p138 = scmp.eq.s32.totalorder %s18, 0
    %p139 = por %p137, %p138
    %s140 = ssub.s32 %s19, %s31
    %s141 = ssub.s32 %s20, %s27
    %s142 = sor.u32 %s140, %s141
    %p143 = scmp.eq.s32.totalorder %s142, 0
    %s145 = sadd.s32 %s144, 1
    %s146 = scalar_select %p143, %s144, %s145
    %p149 = pneg %p143
    %p150 = scmp.eq.s32.totalorder %s12, 1
    %p151 = por %p149, %p150
    %p152 = scmp.ne.s32.totalorder %s144, %s147
    %p153 = scmp.eq.s32.totalorder %s12, 0
    %p154 = por %p152, %p153
    %p155 = scmp.ne.s32.totalorder %s144, %s147
    %p156 = scmp.eq.s32.totalorder %s17, 1
    %p157 = por %p155, %p156
    %p158 = scmp.ne.s32.totalorder %s147, %s148
    %p159 = scmp.eq.s32.totalorder %s17, 0
    %p160 = por %p158, %p159
    %p161 = scmp.ne.s32.totalorder %s147, %s148
    %p162 = scmp.eq.s32.totalorder %s18, 1
    %p163 = por %p161, %p162
    %p165 = scmp.ne.s32.totalorder %s148, %s164
    %p166 = scmp.eq.s32.totalorder %s18, 0
    %p167 = por %p165, %p166
    %s168 = ssub.s32 %s19, %s31
    %s169 = ssub.s32 %s20, %s27
    %s170 = sor.u32 %s168, %s169
    %p171 = scmp.eq.s32.totalorder %s170, 0
    %s173 = sadd.s32 %s172, 1
    %s174 = scalar_select %p171, %s172, %s173
    %p177 = pneg %p171
    %p178 = scmp.eq.s32.totalorder %s12, 1
    %p179 = por %p177, %p178
    %p180 = scmp.ne.s32.totalorder %s172, %s175
    %p181 = scmp.eq.s32.totalorder %s12, 0
    %p182 = por %p180, %p181
    %p183 = scmp.ne.s32.totalorder %s172, %s175
    %p184 = scmp.eq.s32.totalorder %s17, 1
    %p185 = por %p183, %p184
    %p186 = scmp.ne.s32.totalorder %s175, %s176
    %p187 = scmp.eq.s32.totalorder %s17, 0
    %p188 = por %p186, %p187
    %p189 = scmp.ne.s32.totalorder %s175, %s176
    %p190 = scmp.eq.s32.totalorder %s18, 1
    %p191 = por %p189, %p190
    %p193 = scmp.ne.s32.totalorder %s176, %s192
    %p194 = scmp.eq.s32.totalorder %s18, 0
    %p195 = por %p193, %p194
    %p196 = scmp.le.s32.totalorder 1, %s12
    %p197 = scmp.lt.s32.totalorder %s12, 3
    %p198 = pnand %p196, %p197
    %p199 = pneg %p198
    // Predicated region
    $region9: #{fourier_layer.2} parent=5 // pred_check
      _
    $region10: #{fourier_layer.2} parent=5 // pred_check_branch
      %201 = sbr.rel (%p198) target = $region12
    $region11: #{fourier_layer.2} parent=5 // pred_region
      %s202 = ssub.s32 %s12, 1
    $region12: #{fourier_layer.2} parent=5 // pred_fallthru
      _
    %p203 = scmp.lt.s32.totalorder %s12, 2
    // Predicated region
    $region13: #{fourier_layer.2} parent=5 // pred_check
      %p204 = pneg %p203
    $region14: #{fourier_layer.2} parent=5 // pred_check_branch
      %206 = sbr.rel (%p204) target = $region16
    $region15: #{fourier_layer.2} parent=5 // pred_region
      // Predicated region
      $region17: #{fourier_layer.2} parent=15 // pred_check
        %p207 = pneg %p44
      $region18: #{fourier_layer.2} parent=15 // pred_check_branch
        %209 = sbr.rel (%p207) target = $region20
      $region19: #{fourier_layer.2} parent=15 // pred_region
        %s210 = smul.u32 4, %s19
        %p211 = scmp.lt.s32.totalorder %s210, 7
        %s212 = scalar_select %p211, %s210, 7
        %s213 = smul.addr %s212, 4
        %s214 = scalar_lea.vmem %s0, %s213
        %s215 = smul.u32 4, %s19
      $region20: #{fourier_layer.2} parent=15 // pred_fallthru
        _
      // Predicated region
      $region21: #{fourier_layer.2} parent=15 // pred_check
        %p216 = pneg %p70
      $region22: #{fourier_layer.2} parent=15 // pred_check_branch
        %218 = sbr.rel (%p216) target = $region24
      $region23: #{fourier_layer.2} parent=15 // pred_region
        %s219 = smul.u32 4, %s19
        %p220 = scmp.lt.s32.totalorder %s219, 7
        %s221 = scalar_select %p220, %s219, 7
        %s222 = smul.addr %s221, 4
        %s223 = scalar_lea.vmem %s1, %s222
        %s224 = smul.u32 4, %s19
      $region24: #{fourier_layer.2} parent=15 // pred_fallthru
        _
      // Predicated region
      $region25: #{fourier_layer.2} parent=15 // pred_check
        %p225 = pneg %p98
      $region26: #{fourier_layer.2} parent=15 // pred_check_branch
        %227 = sbr.rel (%p225) target = $region28
      $region27: #{fourier_layer.2} parent=15 // pred_region
        %s228 = smul.u32 4, %s19
        %p229 = scmp.lt.s32.totalorder %s228, 7
        %s230 = scalar_select %p229, %s228, 7
        %p231 = scmp.lt.s32.totalorder %s20, 0
        %s232 = scalar_select %p231, %s20, 0
        %s233 = sadd.s32 %s232, %s230
        %s234 = smul.addr %s233, 4
        %s235 = scalar_lea.vmem %s2, %s234
        %s236 = smul.u32 4, %s19
      $region28: #{fourier_layer.2} parent=15 // pred_fallthru
        _
      // Predicated region
      $region29: #{fourier_layer.2} parent=15 // pred_check
        %p237 = pneg %p126
      $region30: #{fourier_layer.2} parent=15 // pred_check_branch
        %239 = sbr.rel (%p237) target = $region32
      $region31: #{fourier_layer.2} parent=15 // pred_region
        %s240 = smul.u32 4, %s19
        %p241 = scmp.lt.s32.totalorder %s240, 7
        %s242 = scalar_select %p241, %s240, 7
        %p243 = scmp.lt.s32.totalorder %s20, 0
        %s244 = scalar_select %p243, %s20, 0
        %s245 = sadd.s32 %s244, %s242
        %s246 = smul.addr %s245, 4
        %s247 = scalar_lea.vmem %s3, %s246
        %s248 = smul.u32 4, %s19
      $region32: #{fourier_layer.2} parent=15 // pred_fallthru
        _
    $region16: #{fourier_layer.2} parent=5 // pred_fallthru
      _
    %p249 = scmp.le.s32.totalorder 1, %s12
    %p250 = scmp.lt.s32.totalorder %s12, 3
    %p251 = pnand %p249, %p250
    %p252 = pneg %p251
    // Predicated region
    $region33: #{fourier_layer.2} parent=5 // pred_check
      _
    $region34: #{fourier_layer.2} parent=5 // pred_check_branch
      %254 = sbr.rel (%p251) target = $region36
    $region35: #{fourier_layer.2} parent=5 // pred_region
      %s255 = ssub.s32 %s12, 1
      %s256 = smul.u32 4, %s21
      %p257 = scmp.lt.s32.totalorder %s256, 7
      %s258 = scalar_select %p257, %s256, 7
      %s259 = smul.addr %s258, 4
      %s260 = scalar_lea.vmem %s0, %s259
      %p261 = pneg %p50
      %p262 = pneg %p47
      %s263 = smul.u32 4, %s21
      %p264 = scmp.lt.s32.totalorder %s263, 7
      %s265 = scalar_select %p264, %s263, 7
      %s266 = smul.addr %s265, 4
      %s267 = scalar_lea.vmem %s1, %s266
      %p268 = pneg %p76
      %p269 = pneg %p73
      %s270 = smul.u32 4, %s21
      %p271 = scmp.lt.s32.totalorder %s270, 7
      %s272 = scalar_select %p271, %s270, 7
      %p273 = scmp.lt.s32.totalorder %s22, 0
      %s274 = scalar_select %p273, %s22, 0
      %s275 = sadd.s32 %s274, %s272
      %s276 = smul.addr %s275, 4
      %s277 = scalar_lea.vmem %s2, %s276
      %p278 = pneg %p104
      %p279 = pneg %p101
      %s280 = smul.u32 4, %s21
      %p281 = scmp.lt.s32.totalorder %s280, 7
      %s282 = scalar_select %p281, %s280, 7
      %p283 = scmp.lt.s32.totalorder %s22, 0
      %s284 = scalar_select %p283, %s22, 0
      %s285 = sadd.s32 %s284, %s282
      %s286 = smul.addr %s285, 4
      %s287 = scalar_lea.vmem %s3, %s286
      %p288 = pneg %p132
      %p289 = pneg %p129
      %p290 = pneg %p160
      %p291 = pneg %p157
      %s292 = smul.u32 4, %s21
      %p293 = scmp.lt.s32.totalorder %s292, 7
      %s294 = scalar_select %p293, %s292, 7
      %p295 = scmp.lt.s32.totalorder %s22, 0
      %s296 = scalar_select %p295, %s22, 0
      %s297 = sadd.s32 %s296, %s294
      %s298 = smul.addr %s297, 4
      %s299 = scalar_lea.vmem %s4, %s298
      %p300 = pneg %p188
      %p301 = pneg %p185
      %s302 = smul.u32 4, %s21
      %p303 = scmp.lt.s32.totalorder %s302, 7
      %s304 = scalar_select %p303, %s302, 7
      %p305 = scmp.lt.s32.totalorder %s22, 0
      %s306 = scalar_select %p305, %s22, 0
      %s307 = sadd.s32 %s306, %s304
      %s308 = smul.addr %s307, 4
      %s309 = scalar_lea.vmem %s5, %s308
      %s310 = smul.u32 4, %s21
      %p311 = scmp.lt.s32.totalorder %s310, 7
      %s312 = scalar_select %p311, %s310, 7
      %s313 = smul.addr %s312, 4
      %s314 = scalar_lea.vmem %s0, %s313
      %s315 = smul.u32 4, %s21
      %s316 = smul.u32 4, %s21
      %p317 = scmp.lt.s32.totalorder %s316, 7
      %s318 = scalar_select %p317, %s316, 7
      %s319 = smul.addr %s318, 4
      %s320 = scalar_lea.vmem %s1, %s319
      %s321 = smul.u32 4, %s21
      %s322 = smul.u32 4, %s21
      %p323 = scmp.lt.s32.totalorder %s322, 7
      %s324 = scalar_select %p323, %s322, 7
      %p325 = scmp.lt.s32.totalorder %s22, 0
      %s326 = scalar_select %p325, %s22, 0
      %s327 = sadd.s32 %s326, %s324
      %s328 = smul.addr %s327, 4
      %s329 = scalar_lea.vmem %s2, %s328
      %s330 = smul.u32 4, %s21
      %s331 = smul.u32 4, %s21
      %p332 = scmp.lt.s32.totalorder %s331, 7
      %s333 = scalar_select %p332, %s331, 7
      %p334 = scmp.lt.s32.totalorder %s22, 0
      %s335 = scalar_select %p334, %s22, 0
      %s336 = sadd.s32 %s335, %s333
      %s337 = smul.addr %s336, 4
      %s338 = scalar_lea.vmem %s3, %s337
      %s339 = smul.u32 4, %s21
      %s340 = smul.u32 4, %s21
      %p341 = scmp.lt.s32.totalorder %s340, 7
      %s342 = scalar_select %p341, %s340, 7
      %p343 = scmp.lt.s32.totalorder %s22, 0
      %s344 = scalar_select %p343, %s22, 0
      %s345 = sadd.s32 %s344, %s342
      %s346 = smul.addr %s345, 4
      %s347 = scalar_lea.vmem %s4, %s346
      %s348 = smul.u32 4, %s21
      %s349 = smul.u32 4, %s21
      %p350 = scmp.lt.s32.totalorder %s349, 7
      %s351 = scalar_select %p350, %s349, 7
      %p352 = scmp.lt.s32.totalorder %s22, 0
      %s353 = scalar_select %p352, %s22, 0
      %s354 = sadd.s32 %s353, %s351
      %s355 = smul.addr %s354, 4
      %s356 = scalar_lea.vmem %s5, %s355
      %s357 = smul.u32 4, %s21
      %v358 = vld [vmem:[%s314] sm:$0xf]
      %v359 = vld [vmem:[%s314 + $0x4] sm:$0xf]
      %v360 = vld [vmem:[%s314 + $0x8] sm:$0xf]
      %v361 = vld [vmem:[%s314 + $0xc] sm:$0xf]
      %v362 = vld [vmem:[%s320] sm:$0xf]
      %v363 = vld [vmem:[%s320 + $0x4] sm:$0xf]
      %v364 = vld [vmem:[%s320 + $0x8] sm:$0xf]
      %v365 = vld [vmem:[%s320 + $0xc] sm:$0xf]
      %v366 = vld [vmem:[%s329] sm:$0xf]
      %v367 = vld [vmem:[%s329 + $0x4] sm:$0xf]
      %v368 = vld [vmem:[%s329 + $0x8] sm:$0xf]
      %v369 = vld [vmem:[%s329 + $0xc] sm:$0xf]
      %v370 = vld [vmem:[%s338] sm:$0xf]
      %v371 = vld [vmem:[%s338 + $0x4] sm:$0xf]
      %v372 = vld [vmem:[%s338 + $0x8] sm:$0xf]
      %v373 = vld [vmem:[%s338 + $0xc] sm:$0xf]
      %vm374 = vcmask 31744
      %v376 = vsel %vm374, %v358, 0
      %vm378 = vcmask 1043456
      %v380 = vsel %vm378, %v366, 0
      %382 = vmatprep.subr.mxu0 0.0
      %383 = vmatpush1.msra.mxu0 %v380
      %384 = vmatprep.subr.mxu0 0.0
      %385 = vmatpush1.msra.mxu0 0.0
      %386 = vmatprep.subr.mxu0 0.0
      %387 = vmatpush1.msra.mxu0 0.0
      %388 = vmatprep.subr.mxu0 0.0
      %389 = vmatpush1.msra.mxu0 0.0
      %390 = vmatprep.subr.mxu0 0.0
      %391 = vmatpush1.msra.mxu0 0.0
      %392 = vmatprep.subr.mxu0 0.0
      %393 = vmatpush1.msra.mxu0 0.0
      %394 = vmatprep.subr.mxu0 0.0
      %395 = vmatpush1.msra.mxu0 0.0
      %396 = vmatprep.subr.mxu0 0.0
      %397 = vmatpush1.msra.mxu0 0.0
      %398 = vmatprep.subr.mxu0 0.0
      %399 = vmatpush1.msra.mxu0 0.0
      %400 = vmatprep.subr.mxu0 0.0
      %401 = vmatpush1.msra.mxu0 0.0
      %402 = vmatprep.subr.mxu0 0.0
      %403 = vmatpush1.msra.mxu0 0.0
      %404 = vmatprep.subr.mxu0 0.0
      %405 = vmatpush1.msra.mxu0 0.0
      %406 = vmatprep.subr.mxu0 0.0
      %407 = vmatpush1.msra.mxu0 0.0
      %408 = vmatprep.subr.mxu0 0.0
      %409 = vmatpush1.msra.mxu0 0.0
      %410 = vmatprep.subr.mxu0 0.0
      %411 = vmatpush1.msra.mxu0 0.0
      %412 = vmatprep.subr.mxu0 0.0
      %413 = vmatpush1.msra.mxu0 0.0
      %414 = vmatprep.subr.mxu0 0.0
      %415 = vmatpush1.msra.mxu0 0.0
      %416 = vmatprep.subr.mxu0 0.0
      %417 = vmatpush1.msra.mxu0 0.0
      %418 = vmatprep.subr.mxu0 0.0
      %419 = vmatpush1.msra.mxu0 0.0
      %420 = vmatprep.subr.mxu0 0.0
      %421 = vmatpush1.msra.mxu0 0.0
      %422 = vmatprep.subr.mxu0 0.0
      %423 = vmatpush1.msra.mxu0 0.0
      %424 = vmatprep.subr.mxu0 0.0
      %425 = vmatpush1.msra.mxu0 0.0
      %426 = vmatprep.subr.mxu0 0.0
      %427 = vmatpush1.msra.mxu0 0.0
      %428 = vmatprep.subr.mxu0 0.0
      %429 = vmatpush1.msra.mxu0 0.0
      %430 = vmatprep.subr.mxu0 0.0
      %431 = vmatpush1.msra.mxu0 0.0
      %432 = vmatprep.subr.mxu0 0.0
      %433 = vmatpush1.msra.mxu0 0.0
      %434 = vmatprep.subr.mxu0 0.0
      %435 = vmatpush1.msra.mxu0 0.0
      %436 = vmatprep.subr.mxu0 0.0
      %437 = vmatpush1.msra.mxu0 0.0
      %438 = vmatprep.subr.mxu0 0.0
      %439 = vmatpush1.msra.mxu0 0.0
      %440 = vmatprep.subr.mxu0 0.0
      %441 = vmatpush1.msra.mxu0 0.0
      %442 = vmatprep.subr.mxu0 0.0
      %443 = vmatpush1.msra.mxu0 0.0
      %444 = vmatprep.subr.mxu0 0.0
      %445 = vmatpush1.msra.mxu0 0.0
      %446 = vmatprep.mubr.f32.mxu0 0.0
      %447 = vmatmul.mubr.f32.gmra.mrb[0].mxu0 %v376
      %v448 = vpop.f32.mrb[0].mxu0
      %v449 = vadd.f32 0.0, %v448
      %v450 = vpop.f32.mrb[0].mxu0
      %451 = vdwg.mxu0
      %v453 = vsel %vm374, %v359, 0
      %v456 = vsel %vm378, %v367, 0
      %458 = vmatprep.subr.mxu0 0.0
      %459 = vmatpush1.msra.mxu0 %v456
      %460 = vmatprep.subr.mxu0 0.0
      %461 = vmatpush1.msra.mxu0 0.0
      %462 = vmatprep.subr.mxu0 0.0
      %463 = vmatpush1.msra.mxu0 0.0
      %464 = vmatprep.subr.mxu0 0.0
      %465 = vmatpush1.msra.mxu0 0.0
      %466 = vmatprep.subr.mxu0 0.0
      %467 = vmatpush1.msra.mxu0 0.0
      %468 = vmatprep.subr.mxu0 0.0
      %469 = vmatpush1.msra.mxu0 0.0
      %470 = vmatprep.subr.mxu0 0.0
      %471 = vmatpush1.msra.mxu0 0.0
      %472 = vmatprep.subr.mxu0 0.0
      %473 = vmatpush1.msra.mxu0 0.0
      %474 = vmatprep.subr.mxu0 0.0
      %475 = vmatpush1.msra.mxu0 0.0
      %476 = vmatprep.subr.mxu0 0.0
      %477 = vmatpush1.msra.mxu0 0.0
      %478 = vmatprep.subr.mxu0 0.0
      %479 = vmatpush1.msra.mxu0 0.0
      %480 = vmatprep.subr.mxu0 0.0
      %481 = vmatpush1.msra.mxu0 0.0
      %482 = vmatprep.subr.mxu0 0.0
      %483 = vmatpush1.msra.mxu0 0.0
      %484 = vmatprep.subr.mxu0 0.0
      %485 = vmatpush1.msra.mxu0 0.0
      %486 = vmatprep.subr.mxu0 0.0
      %487 = vmatpush1.msra.mxu0 0.0
      %488 = vmatprep.subr.mxu0 0.0
      %489 = vmatpush1.msra.mxu0 0.0
      %490 = vmatprep.subr.mxu0 0.0
      %491 = vmatpush1.msra.mxu0 0.0
      %492 = vmatprep.subr.mxu0 0.0
      %493 = vmatpush1.msra.mxu0 0.0
      %494 = vmatprep.subr.mxu0 0.0
      %495 = vmatpush1.msra.mxu0 0.0
      %496 = vmatprep.subr.mxu0 0.0
      %497 = vmatpush1.msra.mxu0 0.0
      %498 = vmatprep.subr.mxu0 0.0
      %499 = vmatpush1.msra.mxu0 0.0
      %500 = vmatprep.subr.mxu0 0.0
      %501 = vmatpush1.msra.mxu0 0.0
      %502 = vmatprep.subr.mxu0 0.0
      %503 = vmatpush1.msra.mxu0 0.0
      %504 = vmatprep.subr.mxu0 0.0
      %505 = vmatpush1.msra.mxu0 0.0
      %506 = vmatprep.subr.mxu0 0.0
      %507 = vmatpush1.msra.mxu0 0.0
      %508 = vmatprep.subr.mxu0 0.0
      %509 = vmatpush1.msra.mxu0 0.0
      %510 = vmatprep.subr.mxu0 0.0
      %511 = vmatpush1.msra.mxu0 0.0
      %512 = vmatprep.subr.mxu0 0.0
      %513 = vmatpush1.msra.mxu0 0.0
      %514 = vmatprep.subr.mxu0 0.0
      %515 = vmatpush1.msra.mxu0 0.0
      %516 = vmatprep.subr.mxu0 0.0
      %517 = vmatpush1.msra.mxu0 0.0
      %518 = vmatprep.subr.mxu0 0.0
      %519 = vmatpush1.msra.mxu0 0.0
      %520 = vmatprep.subr.mxu0 0.0
      %521 = vmatpush1.msra.mxu0 0.0
      %522 = vmatprep.mubr.f32.mxu0 0.0
      %523 = vmatmul.mubr.f32.gmra.mrb[0].mxu0 %v453
      %v524 = vpop.f32.mrb[0].mxu0
      %v525 = vadd.f32 0.0, %v524
      %v526 = vpop.f32.mrb[0].mxu0
      %527 = vdwg.mxu0
      %v529 = vsel %vm374, %v360, 0
      %v532 = vsel %vm378, %v368, 0
      %534 = vmatprep.subr.mxu0 0.0
      %535 = vmatpush1.msra.mxu0 %v532
      %536 = vmatprep.subr.mxu0 0.0
      %537 = vmatpush1.msra.mxu0 0.0
      %538 = vmatprep.subr.mxu0 0.0
      %539 = vmatpush1.msra.mxu0 0.0
      %540 = vmatprep.subr.mxu0 0.0
      %541 = vmatpush1.msra.mxu0 0.0
      %542 = vmatprep.subr.mxu0 0.0
      %543 = vmatpush1.msra.mxu0 0.0
      %544 = vmatprep.subr.mxu0 0.0
      %545 = vmatpush1.msra.mxu0 0.0
      %546 = vmatprep.subr.mxu0 0.0
      %547 = vmatpush1.msra.mxu0 0.0
      %548 = vmatprep.subr.mxu0 0.0
      %549 = vmatpush1.msra.mxu0 0.0
      %550 = vmatprep.subr.mxu0 0.0
      %551 = vmatpush1.msra.mxu0 0.0
      %552 = vmatprep.subr.mxu0 0.0
      %553 = vmatpush1.msra.mxu0 0.0
      %554 = vmatprep.subr.mxu0 0.0
      %555 = vmatpush1.msra.mxu0 0.0
      %556 = vmatprep.subr.mxu0 0.0
      %557 = vmatpush1.msra.mxu0 0.0
      %558 = vmatprep.subr.mxu0 0.0
      %559 = vmatpush1.msra.mxu0 0.0
      %560 = vmatprep.subr.mxu0 0.0
      %561 = vmatpush1.msra.mxu0 0.0
      %562 = vmatprep.subr.mxu0 0.0
      %563 = vmatpush1.msra.mxu0 0.0
      %564 = vmatprep.subr.mxu0 0.0
      %565 = vmatpush1.msra.mxu0 0.0
      %566 = vmatprep.subr.mxu0 0.0
      %567 = vmatpush1.msra.mxu0 0.0
      %568 = vmatprep.subr.mxu0 0.0
      %569 = vmatpush1.msra.mxu0 0.0
      %570 = vmatprep.subr.mxu0 0.0
      %571 = vmatpush1.msra.mxu0 0.0
      %572 = vmatprep.subr.mxu0 0.0
      %573 = vmatpush1.msra.mxu0 0.0
      %574 = vmatprep.subr.mxu0 0.0
      %575 = vmatpush1.msra.mxu0 0.0
      %576 = vmatprep.subr.mxu0 0.0
      %577 = vmatpush1.msra.mxu0 0.0
      %578 = vmatprep.subr.mxu0 0.0
      %579 = vmatpush1.msra.mxu0 0.0
      %580 = vmatprep.subr.mxu0 0.0
      %581 = vmatpush1.msra.mxu0 0.0
      %582 = vmatprep.subr.mxu0 0.0
      %583 = vmatpush1.msra.mxu0 0.0
      %584 = vmatprep.subr.mxu0 0.0
      %585 = vmatpush1.msra.mxu0 0.0
      %586 = vmatprep.subr.mxu0 0.0
      %587 = vmatpush1.msra.mxu0 0.0
      %588 = vmatprep.subr.mxu0 0.0
      %589 = vmatpush1.msra.mxu0 0.0
      %590 = vmatprep.subr.mxu0 0.0
      %591 = vmatpush1.msra.mxu0 0.0
      %592 = vmatprep.subr.mxu0 0.0
      %593 = vmatpush1.msra.mxu0 0.0
      %594 = vmatprep.subr.mxu0 0.0
      %595 = vmatpush1.msra.mxu0 0.0
      %596 = vmatprep.subr.mxu0 0.0
      %597 = vmatpush1.msra.mxu0 0.0
      %598 = vmatprep.mubr.f32.mxu0 0.0
      %599 = vmatmul.mubr.f32.gmra.mrb[0].mxu0 %v529
      %v600 = vpop.f32.mrb[0].mxu0
      %v601 = vadd.f32 0.0, %v600
      %v602 = vpop.f32.mrb[0].mxu0
      %603 = vdwg.mxu0
      %v605 = vsel %vm374, %v361, 0
      %v608 = vsel %vm378, %v369, 0
      %610 = vmatprep.subr.mxu0 0.0
      %611 = vmatpush1.msra.mxu0 %v608
      %612 = vmatprep.subr.mxu0 0.0
      %613 = vmatpush1.msra.mxu0 0.0
      %614 = vmatprep.subr.mxu0 0.0
      %615 = vmatpush1.msra.mxu0 0.0
      %616 = vmatprep.subr.mxu0 0.0
      %617 = vmatpush1.msra.mxu0 0.0
      %618 = vmatprep.subr.mxu0 0.0
      %619 = vmatpush1.msra.mxu0 0.0
      %620 = vmatprep.subr.mxu0 0.0
      %621 = vmatpush1.msra.mxu0 0.0
      %622 = vmatprep.subr.mxu0 0.0
      %623 = vmatpush1.msra.mxu0 0.0
      %624 = vmatprep.subr.mxu0 0.0
      %625 = vmatpush1.msra.mxu0 0.0
      %626 = vmatprep.subr.mxu0 0.0
      %627 = vmatpush1.msra.mxu0 0.0
      %628 = vmatprep.subr.mxu0 0.0
      %629 = vmatpush1.msra.mxu0 0.0
      %630 = vmatprep.subr.mxu0 0.0
      %631 = vmatpush1.msra.mxu0 0.0
      %632 = vmatprep.subr.mxu0 0.0
      %633 = vmatpush1.msra.mxu0 0.0
      %634 = vmatprep.subr.mxu0 0.0
      %635 = vmatpush1.msra.mxu0 0.0
      %636 = vmatprep.subr.mxu0 0.0
      %637 = vmatpush1.msra.mxu0 0.0
      %638 = vmatprep.subr.mxu0 0.0
      %639 = vmatpush1.msra.mxu0 0.0
      %640 = vmatprep.subr.mxu0 0.0
      %641 = vmatpush1.msra.mxu0 0.0
      %642 = vmatprep.subr.mxu0 0.0
      %643 = vmatpush1.msra.mxu0 0.0
      %644 = vmatprep.subr.mxu0 0.0
      %645 = vmatpush1.msra.mxu0 0.0
      %646 = vmatprep.subr.mxu0 0.0
      %647 = vmatpush1.msra.mxu0 0.0
      %648 = vmatprep.subr.mxu0 0.0
      %649 = vmatpush1.msra.mxu0 0.0
      %650 = vmatprep.subr.mxu0 0.0
      %651 = vmatpush1.msra.mxu0 0.0
      %652 = vmatprep.subr.mxu0 0.0
      %653 = vmatpush1.msra.mxu0 0.0
      %654 = vmatprep.subr.mxu0 0.0
      %655 = vmatpush1.msra.mxu0 0.0
      %656 = vmatprep.subr.mxu0 0.0
      %657 = vmatpush1.msra.mxu0 0.0
      %658 = vmatprep.subr.mxu0 0.0
      %659 = vmatpush1.msra.mxu0 0.0
      %660 = vmatprep.subr.mxu0 0.0
      %661 = vmatpush1.msra.mxu0 0.0
      %662 = vmatprep.subr.mxu0 0.0
      %663 = vmatpush1.msra.mxu0 0.0
      %664 = vmatprep.subr.mxu0 0.0
      %665 = vmatpush1.msra.mxu0 0.0
      %666 = vmatprep.subr.mxu0 0.0
      %667 = vmatpush1.msra.mxu0 0.0
      %668 = vmatprep.subr.mxu0 0.0
      %669 = vmatpush1.msra.mxu0 0.0
      %670 = vmatprep.subr.mxu0 0.0
      %671 = vmatpush1.msra.mxu0 0.0
      %672 = vmatprep.subr.mxu0 0.0
      %673 = vmatpush1.msra.mxu0 0.0
      %674 = vmatprep.mubr.f32.mxu0 0.0
      %675 = vmatmul.mubr.f32.gmra.mrb[0].mxu0 %v605
      %v676 = vpop.f32.mrb[0].mxu0
      %v677 = vadd.f32 0.0, %v676
      %v678 = vpop.f32.mrb[0].mxu0
      %679 = vdwg.mxu0
      %v681 = vsel %vm374, %v362, 0
      %v684 = vsel %vm378, %v370, 0
      %686 = vmatprep.subr.mxu0 0.0
      %687 = vmatpush1.msra.mxu0 %v684
      %688 = vmatprep.subr.mxu0 0.0
      %689 = vmatpush1.msra.mxu0 0.0
      %690 = vmatprep.subr.mxu0 0.0
      %691 = vmatpush1.msra.mxu0 0.0
      %692 = vmatprep.subr.mxu0 0.0
      %693 = vmatpush1.msra.mxu0 0.0
      %694 = vmatprep.subr.mxu0 0.0
      %695 = vmatpush1.msra.mxu0 0.0
      %696 = vmatprep.subr.mxu0 0.0
      %697 = vmatpush1.msra.mxu0 0.0
      %698 = vmatprep.subr.mxu0 0.0
      %699 = vmatpush1.msra.mxu0 0.0
      %700 = vmatprep.subr.mxu0 0.0
      %701 = vmatpush1.msra.mxu0 0.0
      %702 = vmatprep.subr.mxu0 0.0
      %703 = vmatpush1.msra.mxu0 0.0
      %704 = vmatprep.subr.mxu0 0.0
      %705 = vmatpush1.msra.mxu0 0.0
      %706 = vmatprep.subr.mxu0 0.0
      %707 = vmatpush1.msra.mxu0 0.0
      %708 = vmatprep.subr.mxu0 0.0
      %709 = vmatpush1.msra.mxu0 0.0
      %710 = vmatprep.subr.mxu0 0.0
      %711 = vmatpush1.msra.mxu0 0.0
      %712 = vmatprep.subr.mxu0 0.0
      %713 = vmatpush1.msra.mxu0 0.0
      %714 = vmatprep.subr.mxu0 0.0
      %715 = vmatpush1.msra.mxu0 0.0
      %716 = vmatprep.subr.mxu0 0.0
      %717 = vmatpush1.msra.mxu0 0.0
      %718 = vmatprep.subr.mxu0 0.0
      %719 = vmatpush1.msra.mxu0 0.0
      %720 = vmatprep.subr.mxu0 0.0
      %721 = vmatpush1.msra.mxu0 0.0
      %722 = vmatprep.subr.mxu0 0.0
      %723 = vmatpush1.msra.mxu0 0.0
      %724 = vmatprep.subr.mxu0 0.0
      %725 = vmatpush1.msra.mxu0 0.0
      %726 = vmatprep.subr.mxu0 0.0
      %727 = vmatpush1.msra.mxu0 0.0
      %728 = vmatprep.subr.mxu0 0.0
      %729 = vmatpush1.msra.mxu0 0.0
      %730 = vmatprep.subr.mxu0 0.0
      %731 = vmatpush1.msra.mxu0 0.0
      %732 = vmatprep.subr.mxu0 0.0
      %733 = vmatpush1.msra.mxu0 0.0
      %734 = vmatprep.subr.mxu0 0.0
      %735 = vmatpush1.msra.mxu0 0.0
      %736 = vmatprep.subr.mxu0 0.0
      %737 = vmatpush1.msra.mxu0 0.0
      %738 = vmatprep.subr.mxu0 0.0
      %739 = vmatpush1.msra.mxu0 0.0
      %740 = vmatprep.subr.mxu0 0.0
      %741 = vmatpush1.msra.mxu0 0.0
      %742 = vmatprep.subr.mxu0 0.0
      %743 = vmatpush1.msra.mxu0 0.0
      %744 = vmatprep.subr.mxu0 0.0
      %745 = vmatpush1.msra.mxu0 0.0
      %746 = vmatprep.subr.mxu0 0.0
      %747 = vmatpush1.msra.mxu0 0.0
      %748 = vmatprep.subr.mxu0 0.0
      %749 = vmatpush1.msra.mxu0 0.0
      %750 = vmatprep.mubr.f32.mxu0 0.0
      %751 = vmatmul.mubr.f32.gmra.mrb[0].mxu0 %v681
      %v752 = vpop.f32.mrb[0].mxu0
      %v753 = vadd.f32 0.0, %v752
      %v754 = vpop.f32.mrb[0].mxu0
      %755 = vdwg.mxu0
      %v757 = vsel %vm374, %v363, 0
      %v760 = vsel %vm378, %v371, 0
      %762 = vmatprep.subr.mxu0 0.0
      %763 = vmatpush1.msra.mxu0 %v760
      %764 = vmatprep.subr.mxu0 0.0
      %765 = vmatpush1.msra.mxu0 0.0
      %766 = vmatprep.subr.mxu0 0.0
      %767 = vmatpush1.msra.mxu0 0.0
      %768 = vmatprep.subr.mxu0 0.0
      %769 = vmatpush1.msra.mxu0 0.0
      %770 = vmatprep.subr.mxu0 0.0
      %771 = vmatpush1.msra.mxu0 0.0
      %772 = vmatprep.subr.mxu0 0.0
      %773 = vmatpush1.msra.mxu0 0.0
      %774 = vmatprep.subr.mxu0 0.0
      %775 = vmatpush1.msra.mxu0 0.0
      %776 = vmatprep.subr.mxu0 0.0
      %777 = vmatpush1.msra.mxu0 0.0
      %778 = vmatprep.subr.mxu0 0.0
      %779 = vmatpush1.msra.mxu0 0.0
      %780 = vmatprep.subr.mxu0 0.0
      %781 = vmatpush1.msra.mxu0 0.0
      %782 = vmatprep.subr.mxu0 0.0
      %783 = vmatpush1.msra.mxu0 0.0
      %784 = vmatprep.subr.mxu0 0.0
      %785 = vmatpush1.msra.mxu0 0.0
      %786 = vmatprep.subr.mxu0 0.0
      %787 = vmatpush1.msra.mxu0 0.0
      %788 = vmatprep.subr.mxu0 0.0
      %789 = vmatpush1.msra.mxu0 0.0
      %790 = vmatprep.subr.mxu0 0.0
      %791 = vmatpush1.msra.mxu0 0.0
      %792 = vmatprep.subr.mxu0 0.0
      %793 = vmatpush1.msra.mxu0 0.0
      %794 = vmatprep.subr.mxu0 0.0
      %795 = vmatpush1.msra.mxu0 0.0
      %796 = vmatprep.subr.mxu0 0.0
      %797 = vmatpush1.msra.mxu0 0.0
      %798 = vmatprep.subr.mxu0 0.0
      %799 = vmatpush1.msra.mxu0 0.0
      %800 = vmatprep.subr.mxu0 0.0
      %801 = vmatpush1.msra.mxu0 0.0
      %802 = vmatprep.subr.mxu0 0.0
      %803 = vmatpush1.msra.mxu0 0.0
      %804 = vmatprep.subr.mxu0 0.0
      %805 = vmatpush1.msra.mxu0 0.0
      %806 = vmatprep.subr.mxu0 0.0
      %807 = vmatpush1.msra.mxu0 0.0
      %808 = vmatprep.subr.mxu0 0.0
      %809 = vmatpush1.msra.mxu0 0.0
      %810 = vmatprep.subr.mxu0 0.0
      %811 = vmatpush1.msra.mxu0 0.0
      %812 = vmatprep.subr.mxu0 0.0
      %813 = vmatpush1.msra.mxu0 0.0
      %814 = vmatprep.subr.mxu0 0.0
      %815 = vmatpush1.msra.mxu0 0.0
      %816 = vmatprep.subr.mxu0 0.0
      %817 = vmatpush1.msra.mxu0 0.0
      %818 = vmatprep.subr.mxu0 0.0
      %819 = vmatpush1.msra.mxu0 0.0
      %820 = vmatprep.subr.mxu0 0.0
      %821 = vmatpush1.msra.mxu0 0.0
      %822 = vmatprep.subr.mxu0 0.0
      %823 = vmatpush1.msra.mxu0 0.0
      %824 = vmatprep.subr.mxu0 0.0
      %825 = vmatpush1.msra.mxu0 0.0
      %826 = vmatprep.mubr.f32.mxu0 0.0
      %827 = vmatmul.mubr.f32.gmra.mrb[0].mxu0 %v757
      %v828 = vpop.f32.mrb[0].mxu0
      %v829 = vadd.f32 0.0, %v828
      %v830 = vpop.f32.mrb[0].mxu0
      %831 = vdwg.mxu0
      %v833 = vsel %vm374, %v364, 0
      %v836 = vsel %vm378, %v372, 0
      %838 = vmatprep.subr.mxu0 0.0
      %839 = vmatpush1.msra.mxu0 %v836
      %840 = vmatprep.subr.mxu0 0.0
      %841 = vmatpush1.msra.mxu0 0.0
      %842 = vmatprep.subr.mxu0 0.0
      %843 = vmatpush1.msra.mxu0 0.0
      %844 = vmatprep.subr.mxu0 0.0
      %845 = vmatpush1.msra.mxu0 0.0
      %846 = vmatprep.subr.mxu0 0.0
      %847 = vmatpush1.msra.mxu0 0.0
      %848 = vmatprep.subr.mxu0 0.0
      %849 = vmatpush1.msra.mxu0 0.0
      %850 = vmatprep.subr.mxu0 0.0
      %851 = vmatpush1.msra.mxu0 0.0
      %852 = vmatprep.subr.mxu0 0.0
      %853 = vmatpush1.msra.mxu0 0.0
      %854 = vmatprep.subr.mxu0 0.0
      %855 = vmatpush1.msra.mxu0 0.0
      %856 = vmatprep.subr.mxu0 0.0
      %857 = vmatpush1.msra.mxu0 0.0
      %858 = vmatprep.subr.mxu0 0.0
      %859 = vmatpush1.msra.mxu0 0.0
      %860 = vmatprep.subr.mxu0 0.0
      %861 = vmatpush1.msra.mxu0 0.0
      %862 = vmatprep.subr.mxu0 0.0
      %863 = vmatpush1.msra.mxu0 0.0
      %864 = vmatprep.subr.mxu0 0.0
      %865 = vmatpush1.msra.mxu0 0.0
      %866 = vmatprep.subr.mxu0 0.0
      %867 = vmatpush1.msra.mxu0 0.0
      %868 = vmatprep.subr.mxu0 0.0
      %869 = vmatpush1.msra.mxu0 0.0
      %870 = vmatprep.subr.mxu0 0.0
      %871 = vmatpush1.msra.mxu0 0.0
      %872 = vmatprep.subr.mxu0 0.0
      %873 = vmatpush1.msra.mxu0 0.0
      %874 = vmatprep.subr.mxu0 0.0
      %875 = vmatpush1.msra.mxu0 0.0
      %876 = vmatprep.subr.mxu0 0.0
      %877 = vmatpush1.msra.mxu0 0.0
      %878 = vmatprep.subr.mxu0 0.0
      %879 = vmatpush1.msra.mxu0 0.0
      %880 = vmatprep.subr.mxu0 0.0
      %881 = vmatpush1.msra.mxu0 0.0
      %882 = vmatprep.subr.mxu0 0.0
      %883 = vmatpush1.msra.mxu0 0.0
      %884 = vmatprep.subr.mxu0 0.0
      %885 = vmatpush1.msra.mxu0 0.0
      %886 = vmatprep.subr.mxu0 0.0
      %887 = vmatpush1.msra.mxu0 0.0
      %888 = vmatprep.subr.mxu0 0.0
      %889 = vmatpush1.msra.mxu0 0.0
      %890 = vmatprep.subr.mxu0 0.0
      %891 = vmatpush1.msra.mxu0 0.0
      %892 = vmatprep.subr.mxu0 0.0
      %893 = vmatpush1.msra.mxu0 0.0
      %894 = vmatprep.subr.mxu0 0.0
      %895 = vmatpush1.msra.mxu0 0.0
      %896 = vmatprep.subr.mxu0 0.0
      %897 = vmatpush1.msra.mxu0 0.0
      %898 = vmatprep.subr.mxu0 0.0
      %899 = vmatpush1.msra.mxu0 0.0
      %900 = vmatprep.subr.mxu0 0.0
      %901 = vmatpush1.msra.mxu0 0.0
      %902 = vmatprep.mubr.f32.mxu0 0.0
      %903 = vmatmul.mubr.f32.gmra.mrb[0].mxu0 %v833
      %v904 = vpop.f32.mrb[0].mxu0
      %v905 = vadd.f32 0.0, %v904
      %v906 = vpop.f32.mrb[0].mxu0
      %907 = vdwg.mxu0
      %v909 = vsel %vm374, %v365, 0
      %v912 = vsel %vm378, %v373, 0
      %914 = vmatprep.subr.mxu0 0.0
      %915 = vmatpush1.msra.mxu0 %v912
      %916 = vmatprep.subr.mxu0 0.0
      %917 = vmatpush1.msra.mxu0 0.0
      %918 = vmatprep.subr.mxu0 0.0
      %919 = vmatpush1.msra.mxu0 0.0
      %920 = vmatprep.subr.mxu0 0.0
      %921 = vmatpush1.msra.mxu0 0.0
      %922 = vmatprep.subr.mxu0 0.0
      %923 = vmatpush1.msra.mxu0 0.0
      %924 = vmatprep.subr.mxu0 0.0
      %925 = vmatpush1.msra.mxu0 0.0
      %926 = vmatprep.subr.mxu0 0.0
      %927 = vmatpush1.msra.mxu0 0.0
      %928 = vmatprep.subr.mxu0 0.0
      %929 = vmatpush1.msra.mxu0 0.0
      %930 = vmatprep.subr.mxu0 0.0
      %931 = vmatpush1.msra.mxu0 0.0
      %932 = vmatprep.subr.mxu0 0.0
      %933 = vmatpush1.msra.mxu0 0.0
      %934 = vmatprep.subr.mxu0 0.0
      %935 = vmatpush1.msra.mxu0 0.0
      %936 = vmatprep.subr.mxu0 0.0
      %937 = vmatpush1.msra.mxu0 0.0
      %938 = vmatprep.subr.mxu0 0.0
      %939 = vmatpush1.msra.mxu0 0.0
      %940 = vmatprep.subr.mxu0 0.0
      %941 = vmatpush1.msra.mxu0 0.0
      %942 = vmatprep.subr.mxu0 0.0
      %943 = vmatpush1.msra.mxu0 0.0
      %944 = vmatprep.subr.mxu0 0.0
      %945 = vmatpush1.msra.mxu0 0.0
      %946 = vmatprep.subr.mxu0 0.0
      %947 = vmatpush1.msra.mxu0 0.0
      %948 = vmatprep.subr.mxu0 0.0
      %949 = vmatpush1.msra.mxu0 0.0
      %950 = vmatprep.subr.mxu0 0.0
      %951 = vmatpush1.msra.mxu0 0.0
      %952 = vmatprep.subr.mxu0 0.0
      %953 = vmatpush1.msra.mxu0 0.0
      %954 = vmatprep.subr.mxu0 0.0
      %955 = vmatpush1.msra.mxu0 0.0
      %956 = vmatprep.subr.mxu0 0.0
      %957 = vmatpush1.msra.mxu0 0.0
      %958 = vmatprep.subr.mxu0 0.0
      %959 = vmatpush1.msra.mxu0 0.0
      %960 = vmatprep.subr.mxu0 0.0
      %961 = vmatpush1.msra.mxu0 0.0
      %962 = vmatprep.subr.mxu0 0.0
      %963 = vmatpush1.msra.mxu0 0.0
      %964 = vmatprep.subr.mxu0 0.0
      %965 = vmatpush1.msra.mxu0 0.0
      %966 = vmatprep.subr.mxu0 0.0
      %967 = vmatpush1.msra.mxu0 0.0
      %968 = vmatprep.subr.mxu0 0.0
      %969 = vmatpush1.msra.mxu0 0.0
      %970 = vmatprep.subr.mxu0 0.0
      %971 = vmatpush1.msra.mxu0 0.0
      %972 = vmatprep.subr.mxu0 0.0
      %973 = vmatpush1.msra.mxu0 0.0
      %974 = vmatprep.subr.mxu0 0.0
      %975 = vmatpush1.msra.mxu0 0.0
      %976 = vmatprep.subr.mxu0 0.0
      %977 = vmatpush1.msra.mxu0 0.0
      %978 = vmatprep.mubr.f32.mxu0 0.0
      %979 = vmatmul.mubr.f32.gmra.mrb[0].mxu0 %v909
      %v980 = vpop.f32.mrb[0].mxu0
      %v981 = vadd.f32 0.0, %v980
      %v982 = vpop.f32.mrb[0].mxu0
      %983 = vdwg.mxu0
      %984 = vmatprep.subr.mxu0 0.0
      %985 = vmatpush1.msra.mxu0 %v684
      %986 = vmatprep.subr.mxu0 0.0
      %987 = vmatpush1.msra.mxu0 0.0
      %988 = vmatprep.subr.mxu0 0.0
      %989 = vmatpush1.msra.mxu0 0.0
      %990 = vmatprep.subr.mxu0 0.0
      %991 = vmatpush1.msra.mxu0 0.0
      %992 = vmatprep.subr.mxu0 0.0
      %993 = vmatpush1.msra.mxu0 0.0
      %994 = vmatprep.subr.mxu0 0.0
      %995 = vmatpush1.msra.mxu0 0.0
      %996 = vmatprep.subr.mxu0 0.0
      %997 = vmatpush1.msra.mxu0 0.0
      %998 = vmatprep.subr.mxu0 0.0
      %999 = vmatpush1.msra.mxu0 0.0
      %1000 = vmatprep.subr.mxu0 0.0
      %1001 = vmatpush1.msra.mxu0 0.0
      %1002 = vmatprep.subr.mxu0 0.0
      %1003 = vmatpush1.msra.mxu0 0.0
      %1004 = vmatprep.subr.mxu0 0.0
      %1005 = vmatpush1.msra.mxu0 0.0
      %1006 = vmatprep.subr.mxu0 0.0
      %1007 = vmatpush1.msra.mxu0 0.0
      %1008 = vmatprep.subr.mxu0 0.0
      %1009 = vmatpush1.msra.mxu0 0.0
      %1010 = vmatprep.subr.mxu0 0.0
      %1011 = vmatpush1.msra.mxu0 0.0
      %1012 = vmatprep.subr.mxu0 0.0
      %1013 = vmatpush1.msra.mxu0 0.0
      %1014 = vmatprep.subr.mxu0 0.0
      %1015 = vmatpush1.msra.mxu0 0.0
      %1016 = vmatprep.subr.mxu0 0.0
      %1017 = vmatpush1.msra.mxu0 0.0
      %1018 = vmatprep.subr.mxu0 0.0
      %1019 = vmatpush1.msra.mxu0 0.0
      %1020 = vmatprep.subr.mxu0 0.0
      %1021 = vmatpush1.msra.mxu0 0.0
      %1022 = vmatprep.subr.mxu0 0.0
      %1023 = vmatpush1.msra.mxu0 0.0
      %1024 = vmatprep.subr.mxu0 0.0
      %1025 = vmatpush1.msra.mxu0 0.0
      %1026 = vmatprep.subr.mxu0 0.0
      %1027 = vmatpush1.msra.mxu0 0.0
      %1028 = vmatprep.subr.mxu0 0.0
      %1029 = vmatpush1.msra.mxu0 0.0
      %1030 = vmatprep.subr.mxu0 0.0
      %1031 = vmatpush1.msra.mxu0 0.0
      %1032 = vmatprep.subr.mxu0 0.0
      %1033 = vmatpush1.msra.mxu0 0.0
      %1034 = vmatprep.subr.mxu0 0.0
      %1035 = vmatpush1.msra.mxu0 0.0
      %1036 = vmatprep.subr.mxu0 0.0
      %1037 = vmatpush1.msra.mxu0 0.0
      %1038 = vmatprep.subr.mxu0 0.0
      %1039 = vmatpush1.msra.mxu0 0.0
      %1040 = vmatprep.subr.mxu0 0.0
      %1041 = vmatpush1.msra.mxu0 0.0
      %1042 = vmatprep.subr.mxu0 0.0
      %1043 = vmatpush1.msra.mxu0 0.0
      %1044 = vmatprep.subr.mxu0 0.0
      %1045 = vmatpush1.msra.mxu0 0.0
      %1046 = vmatprep.subr.mxu0 0.0
      %1047 = vmatpush1.msra.mxu0 0.0
      %1048 = vmatprep.mubr.f32.mxu0 0.0
      %1049 = vmatmul.mubr.f32.gmra.mrb[0].mxu0 %v376
      %v1050 = vpop.f32.mrb[0].mxu0
      %v1051 = vadd.f32 0.0, %v1050
      %v1052 = vpop.f32.mrb[0].mxu0
      %1053 = vdwg.mxu0
      %1054 = vmatprep.subr.mxu0 0.0
      %1055 = vmatpush1.msra.mxu0 %v760
      %1056 = vmatprep.subr.mxu0 0.0
      %1057 = vmatpush1.msra.mxu0 0.0
      %1058 = vmatprep.subr.mxu0 0.0
      %1059 = vmatpush1.msra.mxu0 0.0
      %1060 = vmatprep.subr.mxu0 0.0
      %1061 = vmatpush1.msra.mxu0 0.0
      %1062 = vmatprep.subr.mxu0 0.0
      %1063 = vmatpush1.msra.mxu0 0.0
      %1064 = vmatprep.subr.mxu0 0.0
      %1065 = vmatpush1.msra.mxu0 0.0
      %1066 = vmatprep.subr.mxu0 0.0
      %1067 = vmatpush1.msra.mxu0 0.0
      %1068 = vmatprep.subr.mxu0 0.0
      %1069 = vmatpush1.msra.mxu0 0.0
      %1070 = vmatprep.subr.mxu0 0.0
      %1071 = vmatpush1.msra.mxu0 0.0
      %1072 = vmatprep.subr.mxu0 0.0
      %1073 = vmatpush1.msra.mxu0 0.0
      %1074 = vmatprep.subr.mxu0 0.0
      %1075 = vmatpush1.msra.mxu0 0.0
      %1076 = vmatprep.subr.mxu0 0.0
      %1077 = vmatpush1.msra.mxu0 0.0
      %1078 = vmatprep.subr.mxu0 0.0
      %1079 = vmatpush1.msra.mxu0 0.0
      %1080 = vmatprep.subr.mxu0 0.0
      %1081 = vmatpush1.msra.mxu0 0.0
      %1082 = vmatprep.subr.mxu0 0.0
      %1083 = vmatpush1.msra.mxu0 0.0
      %1084 = vmatprep.subr.mxu0 0.0
      %1085 = vmatpush1.msra.mxu0 0.0
      %1086 = vmatprep.subr.mxu0 0.0
      %1087 = vmatpush1.msra.mxu0 0.0
      %1088 = vmatprep.subr.mxu0 0.0
      %1089 = vmatpush1.msra.mxu0 0.0
      %1090 = vmatprep.subr.mxu0 0.0
      %1091 = vmatpush1.msra.mxu0 0.0
      %1092 = vmatprep.subr.mxu0 0.0
      %1093 = vmatpush1.msra.mxu0 0.0
      %1094 = vmatprep.subr.mxu0 0.0
      %1095 = vmatpush1.msra.mxu0 0.0
      %1096 = vmatprep.subr.mxu0 0.0
      %1097 = vmatpush1.msra.mxu0 0.0
      %1098 = vmatprep.subr.mxu0 0.0
      %1099 = vmatpush1.msra.mxu0 0.0
      %1100 = vmatprep.subr.mxu0 0.0
      %1101 = vmatpush1.msra.mxu0 0.0
      %1102 = vmatprep.subr.mxu0 0.0
      %1103 = vmatpush1.msra.mxu0 0.0
      %1104 = vmatprep.subr.mxu0 0.0
      %1105 = vmatpush1.msra.mxu0 0.0
      %1106 = vmatprep.subr.mxu0 0.0
      %1107 = vmatpush1.msra.mxu0 0.0
      %1108 = vmatprep.subr.mxu0 0.0
      %1109 = vmatpush1.msra.mxu0 0.0
      %1110 = vmatprep.subr.mxu0 0.0
      %1111 = vmatpush1.msra.mxu0 0.0
      %1112 = vmatprep.subr.mxu0 0.0
      %1113 = vmatpush1.msra.mxu0 0.0
      %1114 = vmatprep.subr.mxu0 0.0
      %1115 = vmatpush1.msra.mxu0 0.0
      %1116 = vmatprep.subr.mxu0 0.0
      %1117 = vmatpush1.msra.mxu0 0.0
      %1118 = vmatprep.mubr.f32.mxu0 0.0
      %1119 = vmatmul.mubr.f32.gmra.mrb[0].mxu0 %v453
      %v1120 = vpop.f32.mrb[0].mxu0
      %v1121 = vadd.f32 0.0, %v1120
      %v1122 = vpop.f32.mrb[0].mxu0
      %1123 = vdwg.mxu0
      %1124 = vmatprep.subr.mxu0 0.0
      %1125 = vmatpush1.msra.mxu0 %v836
      %1126 = vmatprep.subr.mxu0 0.0
      %1127 = vmatpush1.msra.mxu0 0.0
      %1128 = vmatprep.subr.mxu0 0.0
      %1129 = vmatpush1.msra.mxu0 0.0
      %1130 = vmatprep.subr.mxu0 0.0
      %1131 = vmatpush1.msra.mxu0 0.0
      %1132 = vmatprep.subr.mxu0 0.0
      %1133 = vmatpush1.msra.mxu0 0.0
      %1134 = vmatprep.subr.mxu0 0.0
      %1135 = vmatpush1.msra.mxu0 0.0
      %1136 = vmatprep.subr.mxu0 0.0
      %1137 = vmatpush1.msra.mxu0 0.0
      %1138 = vmatprep.subr.mxu0 0.0
      %1139 = vmatpush1.msra.mxu0 0.0
      %1140 = vmatprep.subr.mxu0 0.0
      %1141 = vmatpush1.msra.mxu0 0.0
      %1142 = vmatprep.subr.mxu0 0.0
      %1143 = vmatpush1.msra.mxu0 0.0
      %1144 = vmatprep.subr.mxu0 0.0
      %1145 = vmatpush1.msra.mxu0 0.0
      %1146 = vmatprep.subr.mxu0 0.0
      %1147 = vmatpush1.msra.mxu0 0.0
      %1148 = vmatprep.subr.mxu0 0.0
      %1149 = vmatpush1.msra.mxu0 0.0
      %1150 = vmatprep.subr.mxu0 0.0
      %1151 = vmatpush1.msra.mxu0 0.0
      %1152 = vmatprep.subr.mxu0 0.0
      %1153 = vmatpush1.msra.mxu0 0.0
      %1154 = vmatprep.subr.mxu0 0.0
      %1155 = vmatpush1.msra.mxu0 0.0
      %1156 = vmatprep.subr.mxu0 0.0
      %1157 = vmatpush1.msra.mxu0 0.0
      %1158 = vmatprep.subr.mxu0 0.0
      %1159 = vmatpush1.msra.mxu0 0.0
      %1160 = vmatprep.subr.mxu0 0.0
      %1161 = vmatpush1.msra.mxu0 0.0
      %1162 = vmatprep.subr.mxu0 0.0
      %1163 = vmatpush1.msra.mxu0 0.0
      %1164 = vmatprep.subr.mxu0 0.0
      %1165 = vmatpush1.msra.mxu0 0.0
      %1166 = vmatprep.subr.mxu0 0.0
      %1167 = vmatpush1.msra.mxu0 0.0
      %1168 = vmatprep.subr.mxu0 0.0
      %1169 = vmatpush1.msra.mxu0 0.0
      %1170 = vmatprep.subr.mxu0 0.0
      %1171 = vmatpush1.msra.mxu0 0.0
      %1172 = vmatprep.subr.mxu0 0.0
      %1173 = vmatpush1.msra.mxu0 0.0
      %1174 = vmatprep.subr.mxu0 0.0
      %1175 = vmatpush1.msra.mxu0 0.0
      %1176 = vmatprep.subr.mxu0 0.0
      %1177 = vmatpush1.msra.mxu0 0.0
      %1178 = vmatprep.subr.mxu0 0.0
      %1179 = vmatpush1.msra.mxu0 0.0
      %1180 = vmatprep.subr.mxu0 0.0
      %1181 = vmatpush1.msra.mxu0 0.0
      %1182 = vmatprep.subr.mxu0 0.0
      %1183 = vmatpush1.msra.mxu0 0.0
      %1184 = vmatprep.subr.mxu0 0.0
      %1185 = vmatpush1.msra.mxu0 0.0
      %1186 = vmatprep.subr.mxu0 0.0
      %1187 = vmatpush1.msra.mxu0 0.0
      %1188 = vmatprep.mubr.f32.mxu0 0.0
      %1189 = vmatmul.mubr.f32.gmra.mrb[0].mxu0 %v529
      %v1190 = vpop.f32.mrb[0].mxu0
      %v1191 = vadd.f32 0.0, %v1190
      %v1192 = vpop.f32.mrb[0].mxu0
      %1193 = vdwg.mxu0
      %1194 = vmatprep.subr.mxu0 0.0
      %1195 = vmatpush1.msra.mxu0 %v912
      %1196 = vmatprep.subr.mxu0 0.0
      %1197 = vmatpush1.msra.mxu0 0.0
      %1198 = vmatprep.subr.mxu0 0.0
      %1199 = vmatpush1.msra.mxu0 0.0
      %1200 = vmatprep.subr.mxu0 0.0
      %1201 = vmatpush1.msra.mxu0 0.0
      %1202 = vmatprep.subr.mxu0 0.0
      %1203 = vmatpush1.msra.mxu0 0.0
      %1204 = vmatprep.subr.mxu0 0.0
      %1205 = vmatpush1.msra.mxu0 0.0
      %1206 = vmatprep.subr.mxu0 0.0
      %1207 = vmatpush1.msra.mxu0 0.0
      %1208 = vmatprep.subr.mxu0 0.0
      %1209 = vmatpush1.msra.mxu0 0.0
      %1210 = vmatprep.subr.mxu0 0.0
      %1211 = vmatpush1.msra.mxu0 0.0
      %1212 = vmatprep.subr.mxu0 0.0
      %1213 = vmatpush1.msra.mxu0 0.0
      %1214 = vmatprep.subr.mxu0 0.0
      %1215 = vmatpush1.msra.mxu0 0.0
      %1216 = vmatprep.subr.mxu0 0.0
      %1217 = vmatpush1.msra.mxu0 0.0
      %1218 = vmatprep.subr.mxu0 0.0
      %1219 = vmatpush1.msra.mxu0 0.0
      %1220 = vmatprep.subr.mxu0 0.0
      %1221 = vmatpush1.msra.mxu0 0.0
      %1222 = vmatprep.subr.mxu0 0.0
      %1223 = vmatpush1.msra.mxu0 0.0
      %1224 = vmatprep.subr.mxu0 0.0
      %1225 = vmatpush1.msra.mxu0 0.0
      %1226 = vmatprep.subr.mxu0 0.0
      %1227 = vmatpush1.msra.mxu0 0.0
      %1228 = vmatprep.subr.mxu0 0.0
      %1229 = vmatpush1.msra.mxu0 0.0
      %1230 = vmatprep.subr.mxu0 0.0
      %1231 = vmatpush1.msra.mxu0 0.0
      %1232 = vmatprep.subr.mxu0 0.0
      %1233 = vmatpush1.msra.mxu0 0.0
      %1234 = vmatprep.subr.mxu0 0.0
      %1235 = vmatpush1.msra.mxu0 0.0
      %1236 = vmatprep.subr.mxu0 0.0
      %1237 = vmatpush1.msra.mxu0 0.0
      %1238 = vmatprep.subr.mxu0 0.0
      %1239 = vmatpush1.msra.mxu0 0.0
      %1240 = vmatprep.subr.mxu0 0.0
      %1241 = vmatpush1.msra.mxu0 0.0
      %1242 = vmatprep.subr.mxu0 0.0
      %1243 = vmatpush1.msra.mxu0 0.0
      %1244 = vmatprep.subr.mxu0 0.0
      %1245 = vmatpush1.msra.mxu0 0.0
      %1246 = vmatprep.subr.mxu0 0.0
      %1247 = vmatpush1.msra.mxu0 0.0
      %1248 = vmatprep.subr.mxu0 0.0
      %1249 = vmatpush1.msra.mxu0 0.0
      %1250 = vmatprep.subr.mxu0 0.0
      %1251 = vmatpush1.msra.mxu0 0.0
      %1252 = vmatprep.subr.mxu0 0.0
      %1253 = vmatpush1.msra.mxu0 0.0
      %1254 = vmatprep.subr.mxu0 0.0
      %1255 = vmatpush1.msra.mxu0 0.0
      %1256 = vmatprep.subr.mxu0 0.0
      %1257 = vmatpush1.msra.mxu0 0.0
      %1258 = vmatprep.mubr.f32.mxu0 0.0
      %1259 = vmatmul.mubr.f32.gmra.mrb[0].mxu0 %v605
      %v1260 = vpop.f32.mrb[0].mxu0
      %v1261 = vadd.f32 0.0, %v1260
      %v1262 = vpop.f32.mrb[0].mxu0
      %1263 = vdwg.mxu0
      %v1264 = vsub.f32 %v449, %v753
      %v1265 = vsub.f32 %v525, %v829
      %v1266 = vsub.f32 %v601, %v905
      %v1267 = vsub.f32 %v677, %v981
      %1268 = vst [vmem:[%s347] sm:$0xf] %v1264
      %1269 = vst [vmem:[%s347 + $0x4] sm:$0xf] %v1265
      %1270 = vst [vmem:[%s347 + $0x8] sm:$0xf] %v1266
      %1271 = vst [vmem:[%s347 + $0xc] sm:$0xf] %v1267
      %1272 = vmatprep.subr.mxu0 0.0
      %1273 = vmatpush1.msra.mxu0 %v380
      %1274 = vmatprep.subr.mxu0 0.0
      %1275 = vmatpush1.msra.mxu0 0.0
      %1276 = vmatprep.subr.mxu0 0.0
      %1277 = vmatpush1.msra.mxu0 0.0
      %1278 = vmatprep.subr.mxu0 0.0
      %1279 = vmatpush1.msra.mxu0 0.0
      %1280 = vmatprep.subr.mxu0 0.0
      %1281 = vmatpush1.msra.mxu0 0.0
      %1282 = vmatprep.subr.mxu0 0.0
      %1283 = vmatpush1.msra.mxu0 0.0
      %1284 = vmatprep.subr.mxu0 0.0
      %1285 = vmatpush1.msra.mxu0 0.0
      %1286 = vmatprep.subr.mxu0 0.0
      %1287 = vmatpush1.msra.mxu0 0.0
      %1288 = vmatprep.subr.mxu0 0.0
      %1289 = vmatpush1.msra.mxu0 0.0
      %1290 = vmatprep.subr.mxu0 0.0
      %1291 = vmatpush1.msra.mxu0 0.0
      %1292 = vmatprep.subr.mxu0 0.0
      %1293 = vmatpush1.msra.mxu0 0.0
      %1294 = vmatprep.subr.mxu0 0.0
      %1295 = vmatpush1.msra.mxu0 0.0
      %1296 = vmatprep.subr.mxu0 0.0
      %1297 = vmatpush1.msra.mxu0 0.0
      %1298 = vmatprep.subr.mxu0 0.0
      %1299 = vmatpush1.msra.mxu0 0.0
      %1300 = vmatprep.subr.mxu0 0.0
      %1301 = vmatpush1.msra.mxu0 0.0
      %1302 = vmatprep.subr.mxu0 0.0
      %1303 = vmatpush1.msra.mxu0 0.0
      %1304 = vmatprep.subr.mxu0 0.0
      %1305 = vmatpush1.msra.mxu0 0.0
      %1306 = vmatprep.subr.mxu0 0.0
      %1307 = vmatpush1.msra.mxu0 0.0
      %1308 = vmatprep.subr.mxu0 0.0
      %1309 = vmatpush1.msra.mxu0 0.0
      %1310 = vmatprep.subr.mxu0 0.0
      %1311 = vmatpush1.msra.mxu0 0.0
      %1312 = vmatprep.subr.mxu0 0.0
      %1313 = vmatpush1.msra.mxu0 0.0
      %1314 = vmatprep.subr.mxu0 0.0
      %1315 = vmatpush1.msra.mxu0 0.0
      %1316 = vmatprep.subr.mxu0 0.0
      %1317 = vmatpush1.msra.mxu0 0.0
      %1318 = vmatprep.subr.mxu0 0.0
      %1319 = vmatpush1.msra.mxu0 0.0
      %1320 = vmatprep.subr.mxu0 0.0
      %1321 = vmatpush1.msra.mxu0 0.0
      %1322 = vmatprep.subr.mxu0 0.0
      %1323 = vmatpush1.msra.mxu0 0.0
      %1324 = vmatprep.subr.mxu0 0.0
      %1325 = vmatpush1.msra.mxu0 0.0
      %1326 = vmatprep.subr.mxu0 0.0
      %1327 = vmatpush1.msra.mxu0 0.0
      %1328 = vmatprep.subr.mxu0 0.0
      %1329 = vmatpush1.msra.mxu0 0.0
      %1330 = vmatprep.subr.mxu0 0.0
      %1331 = vmatpush1.msra.mxu0 0.0
      %1332 = vmatprep.subr.mxu0 0.0
      %1333 = vmatpush1.msra.mxu0 0.0
      %1334 = vmatprep.subr.mxu0 0.0
      %1335 = vmatpush1.msra.mxu0 0.0
      %1336 = vmatprep.mubr.f32.mxu0 0.0
      %1337 = vmatmul.mubr.f32.gmra.mrb[0].mxu0 %v681
      %v1338 = vpop.f32.mrb[0].mxu0
      %v1339 = vadd.f32 %v1051, %v1338
      %v1340 = vpop.f32.mrb[0].mxu0
      %1341 = vdwg.mxu0
      %1342 = vmatprep.subr.mxu0 0.0
      %1343 = vmatpush1.msra.mxu0 %v456
      %1344 = vmatprep.subr.mxu0 0.0
      %1345 = vmatpush1.msra.mxu0 0.0
      %1346 = vmatprep.subr.mxu0 0.0
      %1347 = vmatpush1.msra.mxu0 0.0
      %1348 = vmatprep.subr.mxu0 0.0
      %1349 = vmatpush1.msra.mxu0 0.0
      %1350 = vmatprep.subr.mxu0 0.0
      %1351 = vmatpush1.msra.mxu0 0.0
      %1352 = vmatprep.subr.mxu0 0.0
      %1353 = vmatpush1.msra.mxu0 0.0
      %1354 = vmatprep.subr.mxu0 0.0
      %1355 = vmatpush1.msra.mxu0 0.0
      %1356 = vmatprep.subr.mxu0 0.0
      %1357 = vmatpush1.msra.mxu0 0.0
      %1358 = vmatprep.subr.mxu0 0.0
      %1359 = vmatpush1.msra.mxu0 0.0
      %1360 = vmatprep.subr.mxu0 0.0
      %1361 = vmatpush1.msra.mxu0 0.0
      %1362 = vmatprep.subr.mxu0 0.0
      %1363 = vmatpush1.msra.mxu0 0.0
      %1364 = vmatprep.subr.mxu0 0.0
      %1365 = vmatpush1.msra.mxu0 0.0
      %1366 = vmatprep.subr.mxu0 0.0
      %1367 = vmatpush1.msra.mxu0 0.0
      %1368 = vmatprep.subr.mxu0 0.0
      %1369 = vmatpush1.msra.mxu0 0.0
      %1370 = vmatprep.subr.mxu0 0.0
      %1371 = vmatpush1.msra.mxu0 0.0
      %1372 = vmatprep.subr.mxu0 0.0
      %1373 = vmatpush1.msra.mxu0 0.0
      %1374 = vmatprep.subr.mxu0 0.0
      %1375 = vmatpush1.msra.mxu0 0.0
      %1376 = vmatprep.subr.mxu0 0.0
      %1377 = vmatpush1.msra.mxu0 0.0
      %1378 = vmatprep.subr.mxu0 0.0
      %1379 = vmatpush1.msra.mxu0 0.0
      %1380 = vmatprep.subr.mxu0 0.0
      %1381 = vmatpush1.msra.mxu0 0.0
      %1382 = vmatprep.subr.mxu0 0.0
      %1383 = vmatpush1.msra.mxu0 0.0
      %1384 = vmatprep.subr.mxu0 0.0
      %1385 = vmatpush1.msra.mxu0 0.0
      %1386 = vmatprep.subr.mxu0 0.0
      %1387 = vmatpush1.msra.mxu0 0.0
      %1388 = vmatprep.subr.mxu0 0.0
      %1389 = vmatpush1.msra.mxu0 0.0
      %1390 = vmatprep.subr.mxu0 0.0
      %1391 = vmatpush1.msra.mxu0 0.0
      %1392 = vmatprep.subr.mxu0 0.0
      %1393 = vmatpush1.msra.mxu0 0.0
      %1394 = vmatprep.subr.mxu0 0.0
      %1395 = vmatpush1.msra.mxu0 0.0
      %1396 = vmatprep.subr.mxu0 0.0
      %1397 = vmatpush1.msra.mxu0 0.0
      %1398 = vmatprep.subr.mxu0 0.0
      %1399 = vmatpush1.msra.mxu0 0.0
      %1400 = vmatprep.subr.mxu0 0.0
      %1401 = vmatpush1.msra.mxu0 0.0
      %1402 = vmatprep.subr.mxu0 0.0
      %1403 = vmatpush1.msra.mxu0 0.0
      %1404 = vmatprep.subr.mxu0 0.0
      %1405 = vmatpush1.msra.mxu0 0.0
      %1406 = vmatprep.mubr.f32.mxu0 0.0
      %1407 = vmatmul.mubr.f32.gmra.mrb[0].mxu0 %v757
      %v1408 = vpop.f32.mrb[0].mxu0
      %v1409 = vadd.f32 %v1121, %v1408
      %v1410 = vpop.f32.mrb[0].mxu0
      %1411 = vdwg.mxu0
      %1412 = vmatprep.subr.mxu0 0.0
      %1413 = vmatpush1.msra.mxu0 %v532
      %1414 = vmatprep.subr.mxu0 0.0
      %1415 = vmatpush1.msra.mxu0 0.0
      %1416 = vmatprep.subr.mxu0 0.0
      %1417 = vmatpush1.msra.mxu0 0.0
      %1418 = vmatprep.subr.mxu0 0.0
      %1419 = vmatpush1.msra.mxu0 0.0
      %1420 = vmatprep.subr.mxu0 0.0
      %1421 = vmatpush1.msra.mxu0 0.0
      %1422 = vmatprep.subr.mxu0 0.0
      %1423 = vmatpush1.msra.mxu0 0.0
      %1424 = vmatprep.subr.mxu0 0.0
      %1425 = vmatpush1.msra.mxu0 0.0
      %1426 = vmatprep.subr.mxu0 0.0
      %1427 = vmatpush1.msra.mxu0 0.0
      %1428 = vmatprep.subr.mxu0 0.0
      %1429 = vmatpush1.msra.mxu0 0.0
      %1430 = vmatprep.subr.mxu0 0.0
      %1431 = vmatpush1.msra.mxu0 0.0
      %1432 = vmatprep.subr.mxu0 0.0
      %1433 = vmatpush1.msra.mxu0 0.0
      %1434 = vmatprep.subr.mxu0 0.0
      %1435 = vmatpush1.msra.mxu0 0.0
      %1436 = vmatprep.subr.mxu0 0.0
      %1437 = vmatpush1.msra.mxu0 0.0
      %1438 = vmatprep.subr.mxu0 0.0
      %1439 = vmatpush1.msra.mxu0 0.0
      %1440 = vmatprep.subr.mxu0 0.0
      %1441 = vmatpush1.msra.mxu0 0.0
      %1442 = vmatprep.subr.mxu0 0.0
      %1443 = vmatpush1.msra.mxu0 0.0
      %1444 = vmatprep.subr.mxu0 0.0
      %1445 = vmatpush1.msra.mxu0 0.0
      %1446 = vmatprep.subr.mxu0 0.0
      %1447 = vmatpush1.msra.mxu0 0.0
      %1448 = vmatprep.subr.mxu0 0.0
      %1449 = vmatpush1.msra.mxu0 0.0
      %1450 = vmatprep.subr.mxu0 0.0
      %1451 = vmatpush1.msra.mxu0 0.0
      %1452 = vmatprep.subr.mxu0 0.0
      %1453 = vmatpush1.msra.mxu0 0.0
      %1454 = vmatprep.subr.mxu0 0.0
      %1455 = vmatpush1.msra.mxu0 0.0
      %1456 = vmatprep.subr.mxu0 0.0
      %1457 = vmatpush1.msra.mxu0 0.0
      %1458 = vmatprep.subr.mxu0 0.0
      %1459 = vmatpush1.msra.mxu0 0.0
      %1460 = vmatprep.subr.mxu0 0.0
      %1461 = vmatpush1.msra.mxu0 0.0
      %1462 = vmatprep.subr.mxu0 0.0
      %1463 = vmatpush1.msra.mxu0 0.0
      %1464 = vmatprep.subr.mxu0 0.0
      %1465 = vmatpush1.msra.mxu0 0.0
      %1466 = vmatprep.subr.mxu0 0.0
      %1467 = vmatpush1.msra.mxu0 0.0
      %1468 = vmatprep.subr.mxu0 0.0
      %1469 = vmatpush1.msra.mxu0 0.0
      %1470 = vmatprep.subr.mxu0 0.0
      %1471 = vmatpush1.msra.mxu0 0.0
      %1472 = vmatprep.subr.mxu0 0.0
      %1473 = vmatpush1.msra.mxu0 0.0
      %1474 = vmatprep.subr.mxu0 0.0
      %1475 = vmatpush1.msra.mxu0 0.0
      %1476 = vmatprep.mubr.f32.mxu0 0.0
      %1477 = vmatmul.mubr.f32.gmra.mrb[0].mxu0 %v833
      %v1478 = vpop.f32.mrb[0].mxu0
      %v1479 = vadd.f32 %v1191, %v1478
      %v1480 = vpop.f32.mrb[0].mxu0
      %1481 = vdwg.mxu0
      %1482 = vmatprep.subr.mxu0 0.0
      %1483 = vmatpush1.msra.mxu0 %v608
      %1484 = vmatprep.subr.mxu0 0.0
      %1485 = vmatpush1.msra.mxu0 0.0
      %1486 = vmatprep.subr.mxu0 0.0
      %1487 = vmatpush1.msra.mxu0 0.0
      %1488 = vmatprep.subr.mxu0 0.0
      %1489 = vmatpush1.msra.mxu0 0.0
      %1490 = vmatprep.subr.mxu0 0.0
      %1491 = vmatpush1.msra.mxu0 0.0
      %1492 = vmatprep.subr.mxu0 0.0
      %1493 = vmatpush1.msra.mxu0 0.0
      %1494 = vmatprep.subr.mxu0 0.0
      %1495 = vmatpush1.msra.mxu0 0.0
      %1496 = vmatprep.subr.mxu0 0.0
      %1497 = vmatpush1.msra.mxu0 0.0
      %1498 = vmatprep.subr.mxu0 0.0
      %1499 = vmatpush1.msra.mxu0 0.0
      %1500 = vmatprep.subr.mxu0 0.0
      %1501 = vmatpush1.msra.mxu0 0.0
      %1502 = vmatprep.subr.mxu0 0.0
      %1503 = vmatpush1.msra.mxu0 0.0
      %1504 = vmatprep.subr.mxu0 0.0
      %1505 = vmatpush1.msra.mxu0 0.0
      %1506 = vmatprep.subr.mxu0 0.0
      %1507 = vmatpush1.msra.mxu0 0.0
      %1508 = vmatprep.subr.mxu0 0.0
      %1509 = vmatpush1.msra.mxu0 0.0
      %1510 = vmatprep.subr.mxu0 0.0
      %1511 = vmatpush1.msra.mxu0 0.0
      %1512 = vmatprep.subr.mxu0 0.0
      %1513 = vmatpush1.msra.mxu0 0.0
      %1514 = vmatprep.subr.mxu0 0.0
      %1515 = vmatpush1.msra.mxu0 0.0
      %1516 = vmatprep.subr.mxu0 0.0
      %1517 = vmatpush1.msra.mxu0 0.0
      %1518 = vmatprep.subr.mxu0 0.0
      %1519 = vmatpush1.msra.mxu0 0.0
      %1520 = vmatprep.subr.mxu0 0.0
      %1521 = vmatpush1.msra.mxu0 0.0
      %1522 = vmatprep.subr.mxu0 0.0
      %1523 = vmatpush1.msra.mxu0 0.0
      %1524 = vmatprep.subr.mxu0 0.0
      %1525 = vmatpush1.msra.mxu0 0.0
      %1526 = vmatprep.subr.mxu0 0.0
      %1527 = vmatpush1.msra.mxu0 0.0
      %1528 = vmatprep.subr.mxu0 0.0
      %1529 = vmatpush1.msra.mxu0 0.0
      %1530 = vmatprep.subr.mxu0 0.0
      %1531 = vmatpush1.msra.mxu0 0.0
      %1532 = vmatprep.subr.mxu0 0.0
      %1533 = vmatpush1.msra.mxu0 0.0
      %1534 = vmatprep.subr.mxu0 0.0
      %1535 = vmatpush1.msra.mxu0 0.0
      %1536 = vmatprep.subr.mxu0 0.0
      %1537 = vmatpush1.msra.mxu0 0.0
      %1538 = vmatprep.subr.mxu0 0.0
      %1539 = vmatpush1.msra.mxu0 0.0
      %1540 = vmatprep.subr.mxu0 0.0
      %1541 = vmatpush1.msra.mxu0 0.0
      %1542 = vmatprep.subr.mxu0 0.0
      %1543 = vmatpush1.msra.mxu0 0.0
      %1544 = vmatprep.subr.mxu0 0.0
      %1545 = vmatpush1.msra.mxu0 0.0
      %1546 = vmatprep.mubr.f32.mxu0 0.0
      %1547 = vmatmul.mubr.f32.gmra.mrb[0].mxu0 %v909
      %v1548 = vpop.f32.mrb[0].mxu0
      %v1549 = vadd.f32 %v1261, %v1548
      %v1550 = vpop.f32.mrb[0].mxu0
      %1551 = vdwg.mxu0
      %1552 = vst [vmem:[%s356] sm:$0xf] %v1339
      %1553 = vst [vmem:[%s356 + $0x4] sm:$0xf] %v1409
      %1554 = vst [vmem:[%s356 + $0x8] sm:$0xf] %v1479
      %1555 = vst [vmem:[%s356 + $0xc] sm:$0xf] %v1549
      %s1556 = smul.u32 4, %s21
      %p1557 = scmp.lt.s32.totalorder %s1556, 7
      %s1558 = scalar_select %p1557, %s1556, 7
      %p1559 = scmp.lt.s32.totalorder %s22, 0
      %s1560 = scalar_select %p1559, %s22, 0
      %s1561 = sadd.s32 %s1560, %s1558
      %s1562 = smul.addr %s1561, 4
      %s1563 = scalar_lea.vmem %s4, %s1562
      %s1564 = smul.u32 4, %s21
      %p1565 = scmp.lt.s32.totalorder %s1564, 7
      %s1566 = scalar_select %p1565, %s1564, 7
      %p1567 = scmp.lt.s32.totalorder %s22, 0
      %s1568 = scalar_select %p1567, %s22, 0
      %s1569 = sadd.s32 %s1568, %s1566
      %s1570 = smul.addr %s1569, 4
      %s1571 = scalar_lea.vmem %s5, %s1570
      // Predicated region
      $region37: #{fourier_layer.2} parent=35 // pred_check
        %p1572 = pneg %p157
      $region38: #{fourier_layer.2} parent=35 // pred_check_branch
        %1574 = sbr.rel (%p1572) target = $region40
      $region39: #{fourier_layer.2} parent=35 // pred_region
        %s1575 = smul.u32 4, %s21
      $region40: #{fourier_layer.2} parent=35 // pred_fallthru
        _
      // Predicated region
      $region41: #{fourier_layer.2} parent=35 // pred_check
        %p1576 = pneg %p185
      $region42: #{fourier_layer.2} parent=35 // pred_check_branch
        %1578 = sbr.rel (%p1576) target = $region44
      $region43: #{fourier_layer.2} parent=35 // pred_region
        %s1579 = smul.u32 4, %s21
      $region44: #{fourier_layer.2} parent=35 // pred_fallthru
        _
    $region36: #{fourier_layer.2} parent=5 // pred_fallthru
      _
    %p1580 = scmp.le.s32.totalorder 2, %s12
    // Predicated region
    $region45: #{fourier_layer.2} parent=5 // pred_check
      %p1581 = pneg %p1580
    $region46: #{fourier_layer.2} parent=5 // pred_check_branch
      %1583 = sbr.rel (%p1581) target = $region48
    $region47: #{fourier_layer.2} parent=5 // pred_region
      %s1584 = ssub.s32 %s12, 2
      // Predicated region
      $region49: #{fourier_layer.2} parent=47 // pred_check
        %p1585 = pneg %p163
      $region50: #{fourier_layer.2} parent=47 // pred_check_branch
        %1587 = sbr.rel (%p1585) target = $region52
      $region51: #{fourier_layer.2} parent=47 // pred_region
        %s1588 = smul.u32 4, %s23
        %p1589 = scmp.lt.s32.totalorder %s1588, 7
        %s1590 = scalar_select %p1589, %s1588, 7
        %p1591 = scmp.lt.s32.totalorder %s24, 0
        %s1592 = scalar_select %p1591, %s24, 0
        %s1593 = sadd.s32 %s1592, %s1590
        %s1594 = smul.addr %s1593, 4
        %s1595 = scalar_lea.vmem %s4, %s1594
      $region52: #{fourier_layer.2} parent=47 // pred_fallthru
        _
      // Predicated region
      $region53: #{fourier_layer.2} parent=47 // pred_check
        %p1596 = pneg %p191
      $region54: #{fourier_layer.2} parent=47 // pred_check_branch
        %1598 = sbr.rel (%p1596) target = $region56
      $region55: #{fourier_layer.2} parent=47 // pred_region
        %s1599 = smul.u32 4, %s23
        %p1600 = scmp.lt.s32.totalorder %s1599, 7
        %s1601 = scalar_select %p1600, %s1599, 7
        %p1602 = scmp.lt.s32.totalorder %s24, 0
        %s1603 = scalar_select %p1602, %s24, 0
        %s1604 = sadd.s32 %s1603, %s1601
        %s1605 = smul.addr %s1604, 4
        %s1606 = scalar_lea.vmem %s5, %s1605
      $region56: #{fourier_layer.2} parent=47 // pred_fallthru
        _
    $region48: #{fourier_layer.2} parent=5 // pred_fallthru
      _
  $region6: #{fourier_layer.2} parent=0 // loop_footer
    %s16 = sadd.s32 1, %s12
  $region7: #{fourier_layer.2} parent=0 // loop_footer_branch
    %11 = sbr.rel target = $region3
  $region8: #{fourier_layer.2} parent=0 // loop_exit
    _

</llo_original>
